<compile_context>
chip_gen: v6e
topology: v6e:2x2x1
jax: 0.10.0
libtpu: 0.0.40
codegen_flags: <defaults>
</compile_context>

<pallas_src>
import functools

import jax
import jax.numpy as jnp
from jax.experimental import pallas as pl
from jax.experimental.pallas import tpu as pltpu

INPUT_SIZE = 32 * 3       # 96
HIDDEN = 64               # logical hidden size (PyTorch module)
HP = 128                  # hidden padded to one full lane-block per gate
OUT_DIM = 10              # logical head width
HEAD_PAD = 128            # lane-dense head output width


def _lstm_head_kernel(x_ref, w_ih_ref, w_hh_ref, b_ref, w_out_ref, b_out_ref,
                      out_ref, xproj_ref, *, T, Bp):
    # ---- hoisted, non-recurrent work -------------------------------------
    # Input projection for ALL timesteps in one MXU matmul; the (1, 4*HP)
    # bias broadcast is materialized exactly once here (not per step).
    xproj_ref[...] = (
        jnp.dot(x_ref[...], w_ih_ref[...], preferred_element_type=jnp.float32)
        + b_ref[...])                                     # (T*Bp, 4*HP) f32

    w_hh = w_hh_ref[...]                                  # (HP, 4*HP) bf16, hoisted

    # ---- sequential recurrence, carry kept in vregs ----------------------
    def step(t, carry):
        h, c = carry                                      # f32 (Bp, HP)
        gates = (xproj_ref[pl.ds(t * Bp, Bp), :]
                 + jnp.dot(h.astype(jnp.bfloat16), w_hh,
                           preferred_element_type=jnp.float32))  # (Bp, 4*HP)
        # Gate slices are 128-lane aligned (0/128/256/384) -> free views.
        i = jax.nn.sigmoid(gates[:, 0 * HP:1 * HP])
        f = jax.nn.sigmoid(gates[:, 1 * HP:2 * HP])
        g = jnp.tanh(gates[:, 2 * HP:3 * HP])
        o = jax.nn.sigmoid(gates[:, 3 * HP:4 * HP])
        c_new = f * c + i * g
        h_new = o * jnp.tanh(c_new)
        return (h_new, c_new)

    h0 = jnp.zeros((Bp, HP), jnp.float32)                 # nn.LSTM(x, None)
    c0 = jnp.zeros((Bp, HP), jnp.float32)
    h_last, _ = jax.lax.fori_loop(0, T, step, (h0, c0), unroll=True)

    # ---- fused Linear head on the last timestep, lane-dense store --------
    out_ref[...] = (jnp.dot(h_last.astype(jnp.bfloat16), w_out_ref[...],
                            preferred_element_type=jnp.float32)
                    + b_out_ref[...]).astype(out_ref.dtype)


def rnn_forward(x, params):
    """x: (B, T, INPUT_SIZE) float32 -> (B, 10) float32."""
    B, T, IN = x.shape
    assert IN == INPUT_SIZE
    w_ih_k, w_hh_k, b_k, w_out_k, b_out_k = params

    Bp = ((B + 7) // 8) * 8                               # sublane-pad batch
    # Lay x out time-major so timestep t is a contiguous (Bp, IN) row block.
    x_tm = jnp.transpose(x, (1, 0, 2))                    # (T, B, IN)
    x_tm = jnp.pad(x_tm, ((0, 0), (0, Bp - B), (0, 0)))
    x2d = x_tm.reshape(T * Bp, IN).astype(jnp.bfloat16)   # (T*Bp, IN)

    kernel = functools.partial(_lstm_head_kernel, T=T, Bp=Bp)
    vmem = pl.BlockSpec(memory_space=pltpu.MemorySpace.VMEM)

    out_p = pl.pallas_call(
        kernel,
        out_shape=jax.ShapeDtypeStruct((Bp, HEAD_PAD), jnp.float32),
        in_specs=[vmem] * 6,
        out_specs=vmem,
        scratch_shapes=[pltpu.VMEM((T * Bp, 4 * HP), jnp.float32)],
    )(x2d, w_ih_k, w_hh_k, b_k, w_out_k, b_out_k)

    return out_p[:B, :OUT_DIM]


def init_params(key):
    """PyTorch-layout raw parameters, uniform(-1/sqrt(H), 1/sqrt(H))."""
    k = 1.0 / jnp.sqrt(jnp.float32(HIDDEN))
    ks = jax.random.split(key, 6)
    w_ih = jax.random.uniform(ks[0], (4 * HIDDEN, INPUT_SIZE), jnp.float32, -k, k)
    w_hh = jax.random.uniform(ks[1], (4 * HIDDEN, HIDDEN), jnp.float32, -k, k)
    b_ih = jax.random.uniform(ks[2], (4 * HIDDEN,), jnp.float32, -k, k)
    b_hh = jax.random.uniform(ks[3], (4 * HIDDEN,), jnp.float32, -k, k)
    w_out = jax.random.uniform(ks[4], (OUT_DIM, HIDDEN), jnp.float32, -k, k)
    b_out = jax.random.uniform(ks[5], (OUT_DIM,), jnp.float32, -k, k)
    return (w_ih, w_hh, b_ih, b_hh, w_out, b_out)


def pack_params(raw):
    """Transpose + pad PyTorch weights into the kernel's lane-aligned layout.

    Gate order (i, f, g, o) is preserved; each gate's 64 columns are padded to
    a full 128-lane block with zeros, so padded lanes contribute exactly 0.
    """
    w_ih, w_hh, b_ih, b_hh, w_out, b_out = raw

    w_ih_g = w_ih.reshape(4, HIDDEN, INPUT_SIZE)
    w_ih_g = jnp.pad(w_ih_g, ((0, 0), (0, HP - HIDDEN), (0, 0)))       # (4,HP,IN)
    w_ih_k = w_ih_g.transpose(2, 0, 1).reshape(INPUT_SIZE, 4 * HP)     # (IN,4HP)

    w_hh_g = w_hh.reshape(4, HIDDEN, HIDDEN)
    w_hh_g = jnp.pad(w_hh_g, ((0, 0), (0, HP - HIDDEN), (0, HP - HIDDEN)))
    w_hh_k = w_hh_g.transpose(2, 0, 1).reshape(HP, 4 * HP)             # (HP,4HP)

    b_g = (b_ih + b_hh).reshape(4, HIDDEN)
    b_k = jnp.pad(b_g, ((0, 0), (0, HP - HIDDEN))).reshape(1, 4 * HP)  # (1,4HP)

    w_out_k = jnp.zeros((HP, HEAD_PAD), jnp.float32).at[:HIDDEN, :OUT_DIM].set(w_out.T)
    b_out_k = jnp.zeros((1, HEAD_PAD), jnp.float32).at[0, :OUT_DIM].set(b_out)

    return (w_ih_k.astype(jnp.bfloat16), w_hh_k.astype(jnp.bfloat16), b_k,
            w_out_k.astype(jnp.bfloat16), b_out_k)


def rnn_ref(x, raw):
    """Pure-JAX reference with the same (bf16-matmul, f32-accumulate) math."""
    w_ih, w_hh, b_ih, b_hh, w_out, b_out = raw
    B = x.shape[0]
    h = jnp.zeros((B, HIDDEN), jnp.float32)
    c = jnp.zeros((B, HIDDEN), jnp.float32)
    bias = (b_ih + b_hh)[None, :]
    w_ih_t = w_ih.T.astype(jnp.bfloat16)
    w_hh_t = w_hh.T.astype(jnp.bfloat16)
    for t in range(x.shape[1]):
        g = (jnp.dot(x[:, t, :].astype(jnp.bfloat16), w_ih_t,
                     preferred_element_type=jnp.float32)
             + jnp.dot(h.astype(jnp.bfloat16), w_hh_t,
                       preferred_element_type=jnp.float32)
             + bias)
        i = jax.nn.sigmoid(g[:, :HIDDEN])
        f = jax.nn.sigmoid(g[:, HIDDEN:2 * HIDDEN])
        gg = jnp.tanh(g[:, 2 * HIDDEN:3 * HIDDEN])
        o = jax.nn.sigmoid(g[:, 3 * HIDDEN:])
        c = f * c + i * gg
        h = o * jnp.tanh(c)
    return (jnp.dot(h.astype(jnp.bfloat16), w_out.T.astype(jnp.bfloat16),
                    preferred_element_type=jnp.float32) + b_out[None, :])


if __name__ == "__main__":
    key = jax.random.PRNGKey(0)
    kx, kp = jax.random.split(key)
    B, T = 2, 8
    x = jax.random.normal(kx, (B, T, INPUT_SIZE), jnp.float32)

    raw = init_params(kp)
    params = pack_params(raw)

    out = jax.block_until_ready(rnn_forward(x, params))
    ref = rnn_ref(x, raw)

    assert out.shape == (B, OUT_DIM)
    assert jnp.allclose(out, ref, atol=2e-3, rtol=2e-3), float(jnp.max(jnp.abs(out - ref)))
    print("KERNEL_OK")
</pallas_src>

<mosaic_0001>
module attributes {stable_mosaic.version = 11 : i64} {
  func.func @_lstm_head_kernel(%arg0: memref<64x96xbf16, #tpu.memory_space<vmem>>, %arg1: memref<96x512xbf16, #tpu.memory_space<vmem>>, %arg2: memref<128x512xbf16, #tpu.memory_space<vmem>>, %arg3: memref<1x512xf32, #tpu.memory_space<vmem>>, %arg4: memref<128x128xbf16, #tpu.memory_space<vmem>>, %arg5: memref<1x128xf32, #tpu.memory_space<vmem>>, %arg6: memref<8x128xf32, #tpu.memory_space<vmem>>, %arg7: memref<64x512xf32, #tpu.memory_space<vmem>>) attributes {dimension_semantics = [], scalar_prefetch = 0 : i64, scratch_operands = 1 : i64, tpu.core_type = #tpu.core_type<tc>} {
    %c0 = arith.constant 0 : index
    %c0_0 = arith.constant 0 : index
    %0 = vector.load %arg0[%c0, %c0_0] : memref<64x96xbf16, #tpu.memory_space<vmem>>, vector<64x96xbf16>
    %c0_1 = arith.constant 0 : index
    %c0_2 = arith.constant 0 : index
    %1 = vector.load %arg1[%c0_1, %c0_2] : memref<96x512xbf16, #tpu.memory_space<vmem>>, vector<96x512xbf16>
    %cst = arith.constant dense<0.000000e+00> : vector<64x512xf32>
    %2 = tpu.matmul %0, %1, %cst {dimension_numbers = #tpu.dot_dimension_numbers<[1], [0], [0], [1], [0, 0, 1, 1], [], []>} : vector<64x96xbf16>, vector<96x512xbf16>, vector<64x512xf32> -> vector<64x512xf32>
    %c0_3 = arith.constant 0 : index
    %c0_4 = arith.constant 0 : index
    %3 = vector.load %arg3[%c0_3, %c0_4] : memref<1x512xf32, #tpu.memory_space<vmem>>, vector<1x512xf32>
    %4 = vector.broadcast %3 : vector<1x512xf32> to vector<64x512xf32>
    %5 = arith.addf %2, %4 : vector<64x512xf32>
    %c0_5 = arith.constant 0 : index
    %c0_6 = arith.constant 0 : index
    %6 = vector.load %arg7[%c0_5, %c0_6] : memref<64x512xf32, #tpu.memory_space<vmem>>, vector<64x512xf32>
    tpu.vector_store %arg7[%c0_5, %c0_6], %5 {strides = array<i32>} : memref<64x512xf32, #tpu.memory_space<vmem>>, vector<64x512xf32>,
    %c0_7 = arith.constant 0 : index
    %c0_8 = arith.constant 0 : index
    %7 = vector.load %arg2[%c0_7, %c0_8] : memref<128x512xbf16, #tpu.memory_space<vmem>>, vector<128x512xbf16>
    %cst_9 = arith.constant 0.000000e+00 : f32
    %8 = vector.broadcast %cst_9 : f32 to vector<8x128xf32>
    %cst_10 = arith.constant 0.000000e+00 : f32
    %9 = vector.broadcast %cst_10 : f32 to vector<8x128xf32>
    %c0_i32 = arith.constant 0 : i32
    %c8_i32 = arith.constant 8 : i32
    %10 = arith.muli %c0_i32, %c8_i32 : i32
    %11 = arith.index_cast %10 : i32 to index
    %c0_11 = arith.constant 0 : index
    %12 = vector.load %arg7[%11, %c0_11] : memref<64x512xf32, #tpu.memory_space<vmem>>, vector<8x512xf32>
    %13 = arith.truncf %8 : vector<8x128xf32> to vector<8x128xbf16>
    %cst_12 = arith.constant dense<0.000000e+00> : vector<8x512xf32>
    %14 = tpu.matmul %13, %7, %cst_12 {dimension_numbers = #tpu.dot_dimension_numbers<[1], [0], [0], [1], [0, 0, 1, 1], [], []>} : vector<8x128xbf16>, vector<128x512xbf16>, vector<8x512xf32> -> vector<8x512xf32>
    %15 = arith.addf %12, %14 : vector<8x512xf32>
    %16 = vector.extract_strided_slice %15 {offsets = [0, 0], sizes = [8, 128], strides = [1, 1]} : vector<8x512xf32> to vector<8x128xf32>
    %17 = arith.negf %16 : vector<8x128xf32>
    %18 = math.exp %17 : vector<8x128xf32>
    %cst_13 = arith.constant 1.000000e+00 : f32
    %19 = vector.broadcast %cst_13 : f32 to vector<8x128xf32>
    %20 = arith.addf %19, %18 : vector<8x128xf32>
    %21 = arith.divf %19, %20 : vector<8x128xf32>
    %22 = vector.extract_strided_slice %15 {offsets = [0, 128], sizes = [8, 128], strides = [1, 1]} : vector<8x512xf32> to vector<8x128xf32>
    %23 = arith.negf %22 : vector<8x128xf32>
    %24 = math.exp %23 : vector<8x128xf32>
    %cst_14 = arith.constant 1.000000e+00 : f32
    %25 = vector.broadcast %cst_14 : f32 to vector<8x128xf32>
    %26 = arith.addf %25, %24 : vector<8x128xf32>
    %27 = arith.divf %25, %26 : vector<8x128xf32>
    %28 = vector.extract_strided_slice %15 {offsets = [0, 256], sizes = [8, 128], strides = [1, 1]} : vector<8x512xf32> to vector<8x128xf32>
    %29 = math.tanh %28 : vector<8x128xf32>
    %30 = vector.extract_strided_slice %15 {offsets = [0, 384], sizes = [8, 128], strides = [1, 1]} : vector<8x512xf32> to vector<8x128xf32>
    %31 = arith.negf %30 : vector<8x128xf32>
    %32 = math.exp %31 : vector<8x128xf32>
    %cst_15 = arith.constant 1.000000e+00 : f32
    %33 = vector.broadcast %cst_15 : f32 to vector<8x128xf32>
    %34 = arith.addf %33, %32 : vector<8x128xf32>
    %35 = arith.divf %33, %34 : vector<8x128xf32>
    %36 = arith.mulf %27, %9 : vector<8x128xf32>
    %37 = arith.mulf %21, %29 : vector<8x128xf32>
    %38 = arith.addf %36, %37 : vector<8x128xf32>
    %39 = math.tanh %38 : vector<8x128xf32>
    %40 = arith.mulf %35, %39 : vector<8x128xf32>
    %c1_i32 = arith.constant 1 : i32
    %c8_i32_16 = arith.constant 8 : i32
    %41 = arith.muli %c1_i32, %c8_i32_16 : i32
    %42 = arith.index_cast %41 : i32 to index
    %c0_17 = arith.constant 0 : index
    %43 = vector.load %arg7[%42, %c0_17] : memref<64x512xf32, #tpu.memory_space<vmem>>, vector<8x512xf32>
    %44 = arith.truncf %40 : vector<8x128xf32> to vector<8x128xbf16>
    %cst_18 = arith.constant dense<0.000000e+00> : vector<8x512xf32>
    %45 = tpu.matmul %44, %7, %cst_18 {dimension_numbers = #tpu.dot_dimension_numbers<[1], [0], [0], [1], [0, 0, 1, 1], [], []>} : vector<8x128xbf16>, vector<128x512xbf16>, vector<8x512xf32> -> vector<8x512xf32>
    %46 = arith.addf %43, %45 : vector<8x512xf32>
    %47 = vector.extract_strided_slice %46 {offsets = [0, 0], sizes = [8, 128], strides = [1, 1]} : vector<8x512xf32> to vector<8x128xf32>
    %48 = arith.negf %47 : vector<8x128xf32>
    %49 = math.exp %48 : vector<8x128xf32>
    %cst_19 = arith.constant 1.000000e+00 : f32
    %50 = vector.broadcast %cst_19 : f32 to vector<8x128xf32>
    %51 = arith.addf %50, %49 : vector<8x128xf32>
    %52 = arith.divf %50, %51 : vector<8x128xf32>
    %53 = vector.extract_strided_slice %46 {offsets = [0, 128], sizes = [8, 128], strides = [1, 1]} : vector<8x512xf32> to vector<8x128xf32>
    %54 = arith.negf %53 : vector<8x128xf32>
    %55 = math.exp %54 : vector<8x128xf32>
    %cst_20 = arith.constant 1.000000e+00 : f32
    %56 = vector.broadcast %cst_20 : f32 to vector<8x128xf32>
    %57 = arith.addf %56, %55 : vector<8x128xf32>
    %58 = arith.divf %56, %57 : vector<8x128xf32>
    %59 = vector.extract_strided_slice %46 {offsets = [0, 256], sizes = [8, 128], strides = [1, 1]} : vector<8x512xf32> to vector<8x128xf32>
    %60 = math.tanh %59 : vector<8x128xf32>
    %61 = vector.extract_strided_slice %46 {offsets = [0, 384], sizes = [8, 128], strides = [1, 1]} : vector<8x512xf32> to vector<8x128xf32>
    %62 = arith.negf %61 : vector<8x128xf32>
    %63 = math.exp %62 : vector<8x128xf32>
    %cst_21 = arith.constant 1.000000e+00 : f32
    %64 = vector.broadcast %cst_21 : f32 to vector<8x128xf32>
    %65 = arith.addf %64, %63 : vector<8x128xf32>
    %66 = arith.divf %64, %65 : vector<8x128xf32>
    %67 = arith.mulf %58, %38 : vector<8x128xf32>
    %68 = arith.mulf %52, %60 : vector<8x128xf32>
    %69 = arith.addf %67, %68 : vector<8x128xf32>
    %70 = math.tanh %69 : vector<8x128xf32>
    %71 = arith.mulf %66, %70 : vector<8x128xf32>
    %c2_i32 = arith.constant 2 : i32
    %c8_i32_22 = arith.constant 8 : i32
    %72 = arith.muli %c2_i32, %c8_i32_22 : i32
    %73 = arith.index_cast %72 : i32 to index
    %c0_23 = arith.constant 0 : index
    %74 = vector.load %arg7[%73, %c0_23] : memref<64x512xf32, #tpu.memory_space<vmem>>, vector<8x512xf32>
    %75 = arith.truncf %71 : vector<8x128xf32> to vector<8x128xbf16>
    %cst_24 = arith.constant dense<0.000000e+00> : vector<8x512xf32>
    %76 = tpu.matmul %75, %7, %cst_24 {dimension_numbers = #tpu.dot_dimension_numbers<[1], [0], [0], [1], [0, 0, 1, 1], [], []>} : vector<8x128xbf16>, vector<128x512xbf16>, vector<8x512xf32> -> vector<8x512xf32>
    %77 = arith.addf %74, %76 : vector<8x512xf32>
    %78 = vector.extract_strided_slice %77 {offsets = [0, 0], sizes = [8, 128], strides = [1, 1]} : vector<8x512xf32> to vector<8x128xf32>
    %79 = arith.negf %78 : vector<8x128xf32>
    %80 = math.exp %79 : vector<8x128xf32>
    %cst_25 = arith.constant 1.000000e+00 : f32
    %81 = vector.broadcast %cst_25 : f32 to vector<8x128xf32>
    %82 = arith.addf %81, %80 : vector<8x128xf32>
    %83 = arith.divf %81, %82 : vector<8x128xf32>
    %84 = vector.extract_strided_slice %77 {offsets = [0, 128], sizes = [8, 128], strides = [1, 1]} : vector<8x512xf32> to vector<8x128xf32>
    %85 = arith.negf %84 : vector<8x128xf32>
    %86 = math.exp %85 : vector<8x128xf32>
    %cst_26 = arith.constant 1.000000e+00 : f32
    %87 = vector.broadcast %cst_26 : f32 to vector<8x128xf32>
    %88 = arith.addf %87, %86 : vector<8x128xf32>
    %89 = arith.divf %87, %88 : vector<8x128xf32>
    %90 = vector.extract_strided_slice %77 {offsets = [0, 256], sizes = [8, 128], strides = [1, 1]} : vector<8x512xf32> to vector<8x128xf32>
    %91 = math.tanh %90 : vector<8x128xf32>
    %92 = vector.extract_strided_slice %77 {offsets = [0, 384], sizes = [8, 128], strides = [1, 1]} : vector<8x512xf32> to vector<8x128xf32>
    %93 = arith.negf %92 : vector<8x128xf32>
    %94 = math.exp %93 : vector<8x128xf32>
    %cst_27 = arith.constant 1.000000e+00 : f32
    %95 = vector.broadcast %cst_27 : f32 to vector<8x128xf32>
    %96 = arith.addf %95, %94 : vector<8x128xf32>
    %97 = arith.divf %95, %96 : vector<8x128xf32>
    %98 = arith.mulf %89, %69 : vector<8x128xf32>
    %99 = arith.mulf %83, %91 : vector<8x128xf32>
    %100 = arith.addf %98, %99 : vector<8x128xf32>
    %101 = math.tanh %100 : vector<8x128xf32>
    %102 = arith.mulf %97, %101 : vector<8x128xf32>
    %c3_i32 = arith.constant 3 : i32
    %c8_i32_28 = arith.constant 8 : i32
    %103 = arith.muli %c3_i32, %c8_i32_28 : i32
    %104 = arith.index_cast %103 : i32 to index
    %c0_29 = arith.constant 0 : index
    %105 = vector.load %arg7[%104, %c0_29] : memref<64x512xf32, #tpu.memory_space<vmem>>, vector<8x512xf32>
    %106 = arith.truncf %102 : vector<8x128xf32> to vector<8x128xbf16>
    %cst_30 = arith.constant dense<0.000000e+00> : vector<8x512xf32>
    %107 = tpu.matmul %106, %7, %cst_30 {dimension_numbers = #tpu.dot_dimension_numbers<[1], [0], [0], [1], [0, 0, 1, 1], [], []>} : vector<8x128xbf16>, vector<128x512xbf16>, vector<8x512xf32> -> vector<8x512xf32>
    %108 = arith.addf %105, %107 : vector<8x512xf32>
    %109 = vector.extract_strided_slice %108 {offsets = [0, 0], sizes = [8, 128], strides = [1, 1]} : vector<8x512xf32> to vector<8x128xf32>
    %110 = arith.negf %109 : vector<8x128xf32>
    %111 = math.exp %110 : vector<8x128xf32>
    %cst_31 = arith.constant 1.000000e+00 : f32
    %112 = vector.broadcast %cst_31 : f32 to vector<8x128xf32>
    %113 = arith.addf %112, %111 : vector<8x128xf32>
    %114 = arith.divf %112, %113 : vector<8x128xf32>
    %115 = vector.extract_strided_slice %108 {offsets = [0, 128], sizes = [8, 128], strides = [1, 1]} : vector<8x512xf32> to vector<8x128xf32>
    %116 = arith.negf %115 : vector<8x128xf32>
    %117 = math.exp %116 : vector<8x128xf32>
    %cst_32 = arith.constant 1.000000e+00 : f32
    %118 = vector.broadcast %cst_32 : f32 to vector<8x128xf32>
    %119 = arith.addf %118, %117 : vector<8x128xf32>
    %120 = arith.divf %118, %119 : vector<8x128xf32>
    %121 = vector.extract_strided_slice %108 {offsets = [0, 256], sizes = [8, 128], strides = [1, 1]} : vector<8x512xf32> to vector<8x128xf32>
    %122 = math.tanh %121 : vector<8x128xf32>
    %123 = vector.extract_strided_slice %108 {offsets = [0, 384], sizes = [8, 128], strides = [1, 1]} : vector<8x512xf32> to vector<8x128xf32>
    %124 = arith.negf %123 : vector<8x128xf32>
    %125 = math.exp %124 : vector<8x128xf32>
    %cst_33 = arith.constant 1.000000e+00 : f32
    %126 = vector.broadcast %cst_33 : f32 to vector<8x128xf32>
    %127 = arith.addf %126, %125 : vector<8x128xf32>
    %128 = arith.divf %126, %127 : vector<8x128xf32>
    %129 = arith.mulf %120, %100 : vector<8x128xf32>
    %130 = arith.mulf %114, %122 : vector<8x128xf32>
    %131 = arith.addf %129, %130 : vector<8x128xf32>
    %132 = math.tanh %131 : vector<8x128xf32>
    %133 = arith.mulf %128, %132 : vector<8x128xf32>
    %c4_i32 = arith.constant 4 : i32
    %c8_i32_34 = arith.constant 8 : i32
    %134 = arith.muli %c4_i32, %c8_i32_34 : i32
    %135 = arith.index_cast %134 : i32 to index
    %c0_35 = arith.constant 0 : index
    %136 = vector.load %arg7[%135, %c0_35] : memref<64x512xf32, #tpu.memory_space<vmem>>, vector<8x512xf32>
    %137 = arith.truncf %133 : vector<8x128xf32> to vector<8x128xbf16>
    %cst_36 = arith.constant dense<0.000000e+00> : vector<8x512xf32>
    %138 = tpu.matmul %137, %7, %cst_36 {dimension_numbers = #tpu.dot_dimension_numbers<[1], [0], [0], [1], [0, 0, 1, 1], [], []>} : vector<8x128xbf16>, vector<128x512xbf16>, vector<8x512xf32> -> vector<8x512xf32>
    %139 = arith.addf %136, %138 : vector<8x512xf32>
    %140 = vector.extract_strided_slice %139 {offsets = [0, 0], sizes = [8, 128], strides = [1, 1]} : vector<8x512xf32> to vector<8x128xf32>
    %141 = arith.negf %140 : vector<8x128xf32>
    %142 = math.exp %141 : vector<8x128xf32>
    %cst_37 = arith.constant 1.000000e+00 : f32
    %143 = vector.broadcast %cst_37 : f32 to vector<8x128xf32>
    %144 = arith.addf %143, %142 : vector<8x128xf32>
    %145 = arith.divf %143, %144 : vector<8x128xf32>
    %146 = vector.extract_strided_slice %139 {offsets = [0, 128], sizes = [8, 128], strides = [1, 1]} : vector<8x512xf32> to vector<8x128xf32>
    %147 = arith.negf %146 : vector<8x128xf32>
    %148 = math.exp %147 : vector<8x128xf32>
    %cst_38 = arith.constant 1.000000e+00 : f32
    %149 = vector.broadcast %cst_38 : f32 to vector<8x128xf32>
    %150 = arith.addf %149, %148 : vector<8x128xf32>
    %151 = arith.divf %149, %150 : vector<8x128xf32>
    %152 = vector.extract_strided_slice %139 {offsets = [0, 256], sizes = [8, 128], strides = [1, 1]} : vector<8x512xf32> to vector<8x128xf32>
    %153 = math.tanh %152 : vector<8x128xf32>
    %154 = vector.extract_strided_slice %139 {offsets = [0, 384], sizes = [8, 128], strides = [1, 1]} : vector<8x512xf32> to vector<8x128xf32>
    %155 = arith.negf %154 : vector<8x128xf32>
    %156 = math.exp %155 : vector<8x128xf32>
    %cst_39 = arith.constant 1.000000e+00 : f32
    %157 = vector.broadcast %cst_39 : f32 to vector<8x128xf32>
    %158 = arith.addf %157, %156 : vector<8x128xf32>
    %159 = arith.divf %157, %158 : vector<8x128xf32>
    %160 = arith.mulf %151, %131 : vector<8x128xf32>
    %161 = arith.mulf %145, %153 : vector<8x128xf32>
    %162 = arith.addf %160, %161 : vector<8x128xf32>
    %163 = math.tanh %162 : vector<8x128xf32>
    %164 = arith.mulf %159, %163 : vector<8x128xf32>
    %c5_i32 = arith.constant 5 : i32
    %c8_i32_40 = arith.constant 8 : i32
    %165 = arith.muli %c5_i32, %c8_i32_40 : i32
    %166 = arith.index_cast %165 : i32 to index
    %c0_41 = arith.constant 0 : index
    %167 = vector.load %arg7[%166, %c0_41] : memref<64x512xf32, #tpu.memory_space<vmem>>, vector<8x512xf32>
    %168 = arith.truncf %164 : vector<8x128xf32> to vector<8x128xbf16>
    %cst_42 = arith.constant dense<0.000000e+00> : vector<8x512xf32>
    %169 = tpu.matmul %168, %7, %cst_42 {dimension_numbers = #tpu.dot_dimension_numbers<[1], [0], [0], [1], [0, 0, 1, 1], [], []>} : vector<8x128xbf16>, vector<128x512xbf16>, vector<8x512xf32> -> vector<8x512xf32>
    %170 = arith.addf %167, %169 : vector<8x512xf32>
    %171 = vector.extract_strided_slice %170 {offsets = [0, 0], sizes = [8, 128], strides = [1, 1]} : vector<8x512xf32> to vector<8x128xf32>
    %172 = arith.negf %171 : vector<8x128xf32>
    %173 = math.exp %172 : vector<8x128xf32>
    %cst_43 = arith.constant 1.000000e+00 : f32
    %174 = vector.broadcast %cst_43 : f32 to vector<8x128xf32>
    %175 = arith.addf %174, %173 : vector<8x128xf32>
    %176 = arith.divf %174, %175 : vector<8x128xf32>
    %177 = vector.extract_strided_slice %170 {offsets = [0, 128], sizes = [8, 128], strides = [1, 1]} : vector<8x512xf32> to vector<8x128xf32>
    %178 = arith.negf %177 : vector<8x128xf32>
    %179 = math.exp %178 : vector<8x128xf32>
    %cst_44 = arith.constant 1.000000e+00 : f32
    %180 = vector.broadcast %cst_44 : f32 to vector<8x128xf32>
    %181 = arith.addf %180, %179 : vector<8x128xf32>
    %182 = arith.divf %180, %181 : vector<8x128xf32>
    %183 = vector.extract_strided_slice %170 {offsets = [0, 256], sizes = [8, 128], strides = [1, 1]} : vector<8x512xf32> to vector<8x128xf32>
    %184 = math.tanh %183 : vector<8x128xf32>
    %185 = vector.extract_strided_slice %170 {offsets = [0, 384], sizes = [8, 128], strides = [1, 1]} : vector<8x512xf32> to vector<8x128xf32>
    %186 = arith.negf %185 : vector<8x128xf32>
    %187 = math.exp %186 : vector<8x128xf32>
    %cst_45 = arith.constant 1.000000e+00 : f32
    %188 = vector.broadcast %cst_45 : f32 to vector<8x128xf32>
    %189 = arith.addf %188, %187 : vector<8x128xf32>
    %190 = arith.divf %188, %189 : vector<8x128xf32>
    %191 = arith.mulf %182, %162 : vector<8x128xf32>
    %192 = arith.mulf %176, %184 : vector<8x128xf32>
    %193 = arith.addf %191, %192 : vector<8x128xf32>
    %194 = math.tanh %193 : vector<8x128xf32>
    %195 = arith.mulf %190, %194 : vector<8x128xf32>
    %c6_i32 = arith.constant 6 : i32
    %c8_i32_46 = arith.constant 8 : i32
    %196 = arith.muli %c6_i32, %c8_i32_46 : i32
    %197 = arith.index_cast %196 : i32 to index
    %c0_47 = arith.constant 0 : index
    %198 = vector.load %arg7[%197, %c0_47] : memref<64x512xf32, #tpu.memory_space<vmem>>, vector<8x512xf32>
    %199 = arith.truncf %195 : vector<8x128xf32> to vector<8x128xbf16>
    %cst_48 = arith.constant dense<0.000000e+00> : vector<8x512xf32>
    %200 = tpu.matmul %199, %7, %cst_48 {dimension_numbers = #tpu.dot_dimension_numbers<[1], [0], [0], [1], [0, 0, 1, 1], [], []>} : vector<8x128xbf16>, vector<128x512xbf16>, vector<8x512xf32> -> vector<8x512xf32>
    %201 = arith.addf %198, %200 : vector<8x512xf32>
    %202 = vector.extract_strided_slice %201 {offsets = [0, 0], sizes = [8, 128], strides = [1, 1]} : vector<8x512xf32> to vector<8x128xf32>
    %203 = arith.negf %202 : vector<8x128xf32>
    %204 = math.exp %203 : vector<8x128xf32>
    %cst_49 = arith.constant 1.000000e+00 : f32
    %205 = vector.broadcast %cst_49 : f32 to vector<8x128xf32>
    %206 = arith.addf %205, %204 : vector<8x128xf32>
    %207 = arith.divf %205, %206 : vector<8x128xf32>
    %208 = vector.extract_strided_slice %201 {offsets = [0, 128], sizes = [8, 128], strides = [1, 1]} : vector<8x512xf32> to vector<8x128xf32>
    %209 = arith.negf %208 : vector<8x128xf32>
    %210 = math.exp %209 : vector<8x128xf32>
    %cst_50 = arith.constant 1.000000e+00 : f32
    %211 = vector.broadcast %cst_50 : f32 to vector<8x128xf32>
    %212 = arith.addf %211, %210 : vector<8x128xf32>
    %213 = arith.divf %211, %212 : vector<8x128xf32>
    %214 = vector.extract_strided_slice %201 {offsets = [0, 256], sizes = [8, 128], strides = [1, 1]} : vector<8x512xf32> to vector<8x128xf32>
    %215 = math.tanh %214 : vector<8x128xf32>
    %216 = vector.extract_strided_slice %201 {offsets = [0, 384], sizes = [8, 128], strides = [1, 1]} : vector<8x512xf32> to vector<8x128xf32>
    %217 = arith.negf %216 : vector<8x128xf32>
    %218 = math.exp %217 : vector<8x128xf32>
    %cst_51 = arith.constant 1.000000e+00 : f32
    %219 = vector.broadcast %cst_51 : f32 to vector<8x128xf32>
    %220 = arith.addf %219, %218 : vector<8x128xf32>
    %221 = arith.divf %219, %220 : vector<8x128xf32>
    %222 = arith.mulf %213, %193 : vector<8x128xf32>
    %223 = arith.mulf %207, %215 : vector<8x128xf32>
    %224 = arith.addf %222, %223 : vector<8x128xf32>
    %225 = math.tanh %224 : vector<8x128xf32>
    %226 = arith.mulf %221, %225 : vector<8x128xf32>
    %c7_i32 = arith.constant 7 : i32
    %c8_i32_52 = arith.constant 8 : i32
    %227 = arith.muli %c7_i32, %c8_i32_52 : i32
    %228 = arith.index_cast %227 : i32 to index
    %c0_53 = arith.constant 0 : index
    %229 = vector.load %arg7[%228, %c0_53] : memref<64x512xf32, #tpu.memory_space<vmem>>, vector<8x512xf32>
    %230 = arith.truncf %226 : vector<8x128xf32> to vector<8x128xbf16>
    %cst_54 = arith.constant dense<0.000000e+00> : vector<8x512xf32>
    %231 = tpu.matmul %230, %7, %cst_54 {dimension_numbers = #tpu.dot_dimension_numbers<[1], [0], [0], [1], [0, 0, 1, 1], [], []>} : vector<8x128xbf16>, vector<128x512xbf16>, vector<8x512xf32> -> vector<8x512xf32>
    %232 = arith.addf %229, %231 : vector<8x512xf32>
    %233 = vector.extract_strided_slice %232 {offsets = [0, 0], sizes = [8, 128], strides = [1, 1]} : vector<8x512xf32> to vector<8x128xf32>
    %234 = arith.negf %233 : vector<8x128xf32>
    %235 = math.exp %234 : vector<8x128xf32>
    %cst_55 = arith.constant 1.000000e+00 : f32
    %236 = vector.broadcast %cst_55 : f32 to vector<8x128xf32>
    %237 = arith.addf %236, %235 : vector<8x128xf32>
    %238 = arith.divf %236, %237 : vector<8x128xf32>
    %239 = vector.extract_strided_slice %232 {offsets = [0, 128], sizes = [8, 128], strides = [1, 1]} : vector<8x512xf32> to vector<8x128xf32>
    %240 = arith.negf %239 : vector<8x128xf32>
    %241 = math.exp %240 : vector<8x128xf32>
    %cst_56 = arith.constant 1.000000e+00 : f32
    %242 = vector.broadcast %cst_56 : f32 to vector<8x128xf32>
    %243 = arith.addf %242, %241 : vector<8x128xf32>
    %244 = arith.divf %242, %243 : vector<8x128xf32>
    %245 = vector.extract_strided_slice %232 {offsets = [0, 256], sizes = [8, 128], strides = [1, 1]} : vector<8x512xf32> to vector<8x128xf32>
    %246 = math.tanh %245 : vector<8x128xf32>
    %247 = vector.extract_strided_slice %232 {offsets = [0, 384], sizes = [8, 128], strides = [1, 1]} : vector<8x512xf32> to vector<8x128xf32>
    %248 = arith.negf %247 : vector<8x128xf32>
    %249 = math.exp %248 : vector<8x128xf32>
    %cst_57 = arith.constant 1.000000e+00 : f32
    %250 = vector.broadcast %cst_57 : f32 to vector<8x128xf32>
    %251 = arith.addf %250, %249 : vector<8x128xf32>
    %252 = arith.divf %250, %251 : vector<8x128xf32>
    %253 = arith.mulf %244, %224 : vector<8x128xf32>
    %254 = arith.mulf %238, %246 : vector<8x128xf32>
    %255 = arith.addf %253, %254 : vector<8x128xf32>
    %256 = math.tanh %255 : vector<8x128xf32>
    %257 = arith.mulf %252, %256 : vector<8x128xf32>
    %c8_i32_58 = arith.constant 8 : i32
    %258 = arith.truncf %257 : vector<8x128xf32> to vector<8x128xbf16>
    %c0_59 = arith.constant 0 : index
    %c0_60 = arith.constant 0 : index
    %259 = vector.load %arg4[%c0_59, %c0_60] : memref<128x128xbf16, #tpu.memory_space<vmem>>, vector<128x128xbf16>
    %cst_61 = arith.constant dense<0.000000e+00> : vector<8x128xf32>
    %260 = tpu.matmul %258, %259, %cst_61 {dimension_numbers = #tpu.dot_dimension_numbers<[1], [0], [0], [1], [0, 0, 1, 1], [], []>} : vector<8x128xbf16>, vector<128x128xbf16>, vector<8x128xf32> -> vector<8x128xf32>
    %c0_62 = arith.constant 0 : index
    %c0_63 = arith.constant 0 : index
    %261 = vector.load %arg5[%c0_62, %c0_63] : memref<1x128xf32, #tpu.memory_space<vmem>>, vector<1x128xf32>
    %262 = vector.broadcast %261 : vector<1x128xf32> to vector<8x128xf32>
    %263 = arith.addf %260, %262 : vector<8x128xf32>
    %c0_64 = arith.constant 0 : index
    %c0_65 = arith.constant 0 : index
    %264 = vector.load %arg6[%c0_64, %c0_65] : memref<8x128xf32, #tpu.memory_space<vmem>>, vector<8x128xf32>
    tpu.vector_store %arg6[%c0_64, %c0_65], %263 {strides = array<i32>} : memref<8x128xf32, #tpu.memory_space<vmem>>, vector<8x128xf32>,
    return
  }
}

</mosaic_0001>

<llo_original>
// kernel: tpu_custom_call.1
$region0: #{tpu_custom_call.1}
  #allocation0 [shape = 'u32[]', space=smem, size = 0x4, offset = 0x4, fixed_abs, tag = 'smem constant byte address 0x4 - core index']
  #allocation1 [shape = 'u32[144,128]{1,0:T(1,128)}', space=vmem, size = 0x12000, scoped, tag = 'internal scratch']
  #allocation2 [shape = 'f32[64,512]{1,0:T(8,128)}', space=vmem, size = 0x20000, scoped, tag = 'scratch operand']
  %s0 = inlined_call_operand.hbm [shape: bf16[64,96], index: 0, kind: input, shape index: {}]
  %s1 = inlined_call_operand.hbm [shape: bf16[96,512], index: 1, kind: input, shape index: {}]
  %s2 = inlined_call_operand.hbm [shape: bf16[128,512], index: 2, kind: input, shape index: {}]
  %s3 = inlined_call_operand.vmem [shape: f32[1,512], index: 3, kind: input, shape index: {}]
  %s4 = inlined_call_operand.hbm [shape: bf16[128,128], index: 4, kind: input, shape index: {}]
  %s5 = inlined_call_operand.vmem [shape: f32[1,128], index: 5, kind: input, shape index: {}]
  %s6 = inlined_call_operand.hbm [shape: f32[8,128], index: 6, kind: output, shape index: {}]
  %s7 = sld [smem:[#allocation0]]
  $region50: #{tpu_custom_call.1} parent=0
    _
  %s9 = ssub.s32 1, %s7
  %s10 = scalar_select 0, %s9, %s7
  $region1: #{tpu_custom_call.1} parent=0
    #allocation3 [shape = 'u8[16384]{0}', space=vmem, size = 0x4000, scoped, tag = 'input window, operand 0, single buffered']
    #allocation4 [shape = 's32[1]{0}', space=sflag, size = 0x4, scoped, tag = 'scoped memory for tpu_custom_call.1']
    #allocation5 [shape = 's32[1]{0}', space=sflag, size = 0x4, scoped, tag = 'scoped memory for tpu_custom_call.1']
    #allocation6 [shape = 'u8[98304]{0}', space=vmem, size = 0x18000, scoped, tag = 'input window, operand 1, single buffered']
    #allocation7 [shape = 's32[1]{0}', space=sflag, size = 0x4, scoped, tag = 'scoped memory for tpu_custom_call.1']
    #allocation8 [shape = 'u8[131072]{0}', space=vmem, size = 0x20000, scoped, tag = 'input window, operand 2, single buffered']
    #allocation9 [shape = 'u8[32768]{0}', space=vmem, size = 0x8000, scoped, tag = 'input window, operand 4, single buffered']
    #allocation10 [shape = 's32[1]{0}', space=sflag, size = 0x4, scoped, tag = 'scoped memory for tpu_custom_call.1']
    #allocation11 [shape = 'u8[4096]{0}', space=vmem, size = 0x1000, scoped, tag = 'output window, operand 0, single buffered']
    %11 = vsyncpa [#allocation4], 0
    %12 = vsyncpa [#allocation7], 0
    %13 = vsyncpa [#allocation10], 0
    %14 = vsyncpa [#allocation5], 0
    // Predicated region
    $region2: #{tpu_custom_call.1} parent=1 // pred_check
      _
    $region3: #{tpu_custom_call.1} parent=1 // pred_check_branch
      %16 = sbr.rel (0) target = $region5
    $region4: #{tpu_custom_call.1} parent=1 // pred_region
      %s18 = ssub.s32 512, 512
      %19 = vsyncadd [#allocation4], %s18
      %s20 = sshll.u32 [#allocation3], 4
      %s21 = int_to_ptr.vmem [resolvable:$true] %s20
      %26 = dma.hbm_to_vmem [thread:$0]  %s0, 512, %s21, [#allocation4], 64, 64, 4
    $region5: #{tpu_custom_call.1} parent=1 // pred_fallthru
      _
    // Predicated region
    $region6: #{tpu_custom_call.1} parent=1 // pred_check
      _
    $region7: #{tpu_custom_call.1} parent=1 // pred_check_branch
      %28 = sbr.rel (0) target = $region9
    $region8: #{tpu_custom_call.1} parent=1 // pred_region
      %s30 = ssub.s32 3072, 3072
      %31 = vsyncadd [#allocation7], %s30
      %s32 = sshll.u32 [#allocation6], 4
      %s33 = int_to_ptr.vmem [resolvable:$true] %s32
      %38 = dma.hbm_to_vmem [thread:$0]  %s1, 3072, %s33, [#allocation7], 256, 256, 16
    $region9: #{tpu_custom_call.1} parent=1 // pred_fallthru
      _
    // Predicated region
    $region10: #{tpu_custom_call.1} parent=1 // pred_check
      _
    $region11: #{tpu_custom_call.1} parent=1 // pred_check_branch
      %40 = sbr.rel (0) target = $region13
    $region12: #{tpu_custom_call.1} parent=1 // pred_region
      %s42 = ssub.s32 4096, 4096
      %43 = vsyncadd [#allocation7], %s42
      %s44 = sshll.u32 [#allocation8], 4
      %s45 = int_to_ptr.vmem [resolvable:$true] %s44
      %50 = dma.hbm_to_vmem [thread:$0]  %s2, 4096, %s45, [#allocation7], 256, 256, 16
    $region13: #{tpu_custom_call.1} parent=1 // pred_fallthru
      _
    // Predicated region
    $region14: #{tpu_custom_call.1} parent=1 // pred_check
      _
    $region15: #{tpu_custom_call.1} parent=1 // pred_check_branch
      %52 = sbr.rel (0) target = $region17
    $region16: #{tpu_custom_call.1} parent=1 // pred_region
      _
    $region17: #{tpu_custom_call.1} parent=1 // pred_fallthru
      _
    // Predicated region
    $region18: #{tpu_custom_call.1} parent=1 // pred_check
      _
    $region19: #{tpu_custom_call.1} parent=1 // pred_check_branch
      %54 = sbr.rel (0) target = $region21
    $region20: #{tpu_custom_call.1} parent=1 // pred_region
      %s56 = ssub.s32 1024, 1024
      %57 = vsyncadd [#allocation10], %s56
      %s58 = sshll.u32 [#allocation9], 4
      %s59 = int_to_ptr.vmem [resolvable:$true] %s58
      %64 = dma.hbm_to_vmem [thread:$0]  %s4, 1024, %s59, [#allocation10], 64, 64, 4
    $region21: #{tpu_custom_call.1} parent=1 // pred_fallthru
      _
    // Predicated region
    $region22: #{tpu_custom_call.1} parent=1 // pred_check
      _
    $region23: #{tpu_custom_call.1} parent=1 // pred_check_branch
      %66 = sbr.rel (0) target = $region25
    $region24: #{tpu_custom_call.1} parent=1 // pred_region
      _
    $region25: #{tpu_custom_call.1} parent=1 // pred_fallthru
      _
    // Predicated region
    $region26: #{tpu_custom_call.1} parent=1 // pred_check
      _
    $region27: #{tpu_custom_call.1} parent=1 // pred_check_branch
      %68 = sbr.rel (0) target = $region29
    $region28: #{tpu_custom_call.1} parent=1 // pred_region
      %69 = dma.done [#allocation4], 512
    $region29: #{tpu_custom_call.1} parent=1 // pred_fallthru
      _
    // Predicated region
    $region30: #{tpu_custom_call.1} parent=1 // pred_check
      _
    $region31: #{tpu_custom_call.1} parent=1 // pred_check_branch
      %71 = sbr.rel (0) target = $region33
    $region32: #{tpu_custom_call.1} parent=1 // pred_region
      %72 = dma.done [#allocation7], 3072
    $region33: #{tpu_custom_call.1} parent=1 // pred_fallthru
      _
    // Predicated region
    $region34: #{tpu_custom_call.1} parent=1 // pred_check
      _
    $region35: #{tpu_custom_call.1} parent=1 // pred_check_branch
      %74 = sbr.rel (0) target = $region37
    $region36: #{tpu_custom_call.1} parent=1 // pred_region
      %75 = dma.done [#allocation7], 4096
    $region37: #{tpu_custom_call.1} parent=1 // pred_fallthru
      _
    // Predicated region
    $region38: #{tpu_custom_call.1} parent=1 // pred_check
      _
    $region39: #{tpu_custom_call.1} parent=1 // pred_check_branch
      %77 = sbr.rel (0) target = $region41
    $region40: #{tpu_custom_call.1} parent=1 // pred_region
      %78 = dma.done [#allocation10], 1024
    $region41: #{tpu_custom_call.1} parent=1 // pred_fallthru
      _
    %v80 = vld [vmem:[#allocation3] sm:$0xf]
    %v81 = vld [vmem:[#allocation3 + $0x4] sm:$0xf]
    %v82 = vld [vmem:[#allocation3 + $0x8] sm:$0xf]
    %v83 = vld [vmem:[#allocation3 + $0xc] sm:$0xf]
    %v84 = vld [vmem:[#allocation3 + $0x10] sm:$0xf]
    %v85 = vld [vmem:[#allocation3 + $0x14] sm:$0xf]
    %v86 = vld [vmem:[#allocation3 + $0x18] sm:$0xf]
    %v87 = vld [vmem:[#allocation3 + $0x1c] sm:$0xf]
    %v88 = vld [vmem:[#allocation6] sm:$0xff]
    %v89 = vld [vmem:[#allocation6 + $0x8] sm:$0xff]
    %v90 = vld [vmem:[#allocation6 + $0x10] sm:$0xff]
    %v91 = vld [vmem:[#allocation6 + $0x18] sm:$0xff]
    %v92 = vld [vmem:[#allocation6 + $0x20] sm:$0xff]
    %v93 = vld [vmem:[#allocation6 + $0x28] sm:$0xff]
    %v94 = vld [vmem:[#allocation6 + $0x30] sm:$0xff]
    %v95 = vld [vmem:[#allocation6 + $0x38] sm:$0xff]
    %v96 = vld [vmem:[#allocation6 + $0x40] sm:$0xff]
    %v97 = vld [vmem:[#allocation6 + $0x48] sm:$0xff]
    %v98 = vld [vmem:[#allocation6 + $0x50] sm:$0xff]
    %v99 = vld [vmem:[#allocation6 + $0x58] sm:$0xff]
    %v100 = vld [vmem:[#allocation6 + $0x60] sm:$0xff]
    %v101 = vld [vmem:[#allocation6 + $0x68] sm:$0xff]
    %v102 = vld [vmem:[#allocation6 + $0x70] sm:$0xff]
    %v103 = vld [vmem:[#allocation6 + $0x78] sm:$0xff]
    %v104 = vld [vmem:[#allocation6 + $0x80] sm:$0xff]
    %v105 = vld [vmem:[#allocation6 + $0x88] sm:$0xff]
    %v106 = vld [vmem:[#allocation6 + $0x90] sm:$0xff]
    %v107 = vld [vmem:[#allocation6 + $0x98] sm:$0xff]
    %v108 = vld [vmem:[#allocation6 + $0xa0] sm:$0xff]
    %v109 = vld [vmem:[#allocation6 + $0xa8] sm:$0xff]
    %v110 = vld [vmem:[#allocation6 + $0xb0] sm:$0xff]
    %v111 = vld [vmem:[#allocation6 + $0xb8] sm:$0xff]
    %v112 = vld [vmem:[%s3] sm:$0xf]
    %v114 = vlaneseq
    %v115 = vshrl.u32 %v114, 7
    %v116 = vsub.s32 0, %v115
    %v117 = vrot.slane %v112, %v116
    %v118 = vlaneseq
    %v119 = vshrl.u32 %v118, 7
    %v120 = vsub.s32 1, %v119
    %v121 = vrot.slane %v112, %v120
    %v122 = vlaneseq
    %v123 = vshrl.u32 %v122, 7
    %v124 = vsub.s32 2, %v123
    %v125 = vrot.slane %v112, %v124
    %v126 = vlaneseq
    %v127 = vshrl.u32 %v126, 7
    %v128 = vsub.s32 3, %v127
    %v129 = vrot.slane %v112, %v128
    %v142 = vunpack.c.l.b16 %v80
    %v143 = vunpack.c.l.b16 %v81
    %v144 = vunpack.c.l.b16 %v82
    %v145 = vunpack.c.l.b16 %v83
    %v146 = vunpack.c.l.b16 %v84
    %v147 = vunpack.c.l.b16 %v85
    %v148 = vunpack.c.l.b16 %v86
    %v149 = vunpack.c.l.b16 %v87
    %v150 = vpack.c.b16 %v143, %v142
    %v151 = vpack.c.b16 %v145, %v144
    %v152 = vpack.c.b16 %v147, %v146
    %v153 = vpack.c.b16 %v149, %v148
    %v178 = vunpack.c.l.b16 %v88
    %v179 = vunpack.c.h.b16 %v88
    %v180 = vunpack.c.l.b16 %v89
    %v181 = vunpack.c.h.b16 %v89
    %v182 = vunpack.c.l.b16 %v90
    %v183 = vunpack.c.h.b16 %v90
    %v184 = vunpack.c.l.b16 %v91
    %v185 = vunpack.c.h.b16 %v91
    %v186 = vunpack.c.l.b16 %v92
    %v187 = vunpack.c.h.b16 %v92
    %v188 = vunpack.c.l.b16 %v93
    %v189 = vunpack.c.h.b16 %v93
    %v190 = vunpack.c.l.b16 %v94
    %v191 = vunpack.c.h.b16 %v94
    %v192 = vunpack.c.l.b16 %v95
    %v193 = vunpack.c.h.b16 %v95
    %v194 = vunpack.c.l.b16 %v96
    %v195 = vunpack.c.h.b16 %v96
    %v196 = vunpack.c.l.b16 %v97
    %v197 = vunpack.c.h.b16 %v97
    %v198 = vunpack.c.l.b16 %v98
    %v199 = vunpack.c.h.b16 %v98
    %v200 = vunpack.c.l.b16 %v99
    %v201 = vunpack.c.h.b16 %v99
    %v202 = vunpack.c.l.b16 %v100
    %v203 = vunpack.c.h.b16 %v100
    %v204 = vunpack.c.l.b16 %v101
    %v205 = vunpack.c.h.b16 %v101
    %v206 = vunpack.c.l.b16 %v102
    %v207 = vunpack.c.h.b16 %v102
    %v208 = vunpack.c.l.b16 %v103
    %v209 = vunpack.c.h.b16 %v103
    %v210 = vunpack.c.l.b16 %v104
    %v211 = vunpack.c.h.b16 %v104
    %v212 = vunpack.c.l.b16 %v105
    %v213 = vunpack.c.h.b16 %v105
    %v214 = vunpack.c.l.b16 %v106
    %v215 = vunpack.c.h.b16 %v106
    %v216 = vunpack.c.l.b16 %v107
    %v217 = vunpack.c.h.b16 %v107
    %v218 = vunpack.c.l.b16 %v108
    %v219 = vunpack.c.h.b16 %v108
    %v220 = vunpack.c.l.b16 %v109
    %v221 = vunpack.c.h.b16 %v109
    %v222 = vunpack.c.l.b16 %v110
    %v223 = vunpack.c.h.b16 %v110
    %v224 = vunpack.c.l.b16 %v111
    %v225 = vunpack.c.h.b16 %v111
    %v226 = vpack.c.b16 %v182, %v178
    %v227 = vpack.c.b16 %v183, %v179
    %v228 = vpack.c.b16 %v184, %v180
    %v229 = vpack.c.b16 %v185, %v181
    %v230 = vpack.c.b16 %v190, %v186
    %v231 = vpack.c.b16 %v191, %v187
    %v232 = vpack.c.b16 %v192, %v188
    %v233 = vpack.c.b16 %v193, %v189
    %v234 = vpack.c.b16 %v198, %v194
    %v235 = vpack.c.b16 %v199, %v195
    %v236 = vpack.c.b16 %v200, %v196
    %v237 = vpack.c.b16 %v201, %v197
    %v238 = vpack.c.b16 %v206, %v202
    %v239 = vpack.c.b16 %v207, %v203
    %v240 = vpack.c.b16 %v208, %v204
    %v241 = vpack.c.b16 %v209, %v205
    %v242 = vpack.c.b16 %v214, %v210
    %v243 = vpack.c.b16 %v215, %v211
    %v244 = vpack.c.b16 %v216, %v212
    %v245 = vpack.c.b16 %v217, %v213
    %v246 = vpack.c.b16 %v222, %v218
    %v247 = vpack.c.b16 %v223, %v219
    %v248 = vpack.c.b16 %v224, %v220
    %v249 = vpack.c.b16 %v225, %v221
    %vm274 = vcmask 785408
    %v276 = vsel %vm274, %v150, 0
    %v279 = vsel %vm274, %v151, 0
    %v282 = vsel %vm274, %v152, 0
    %v285 = vsel %vm274, %v153, 0
    %287 = vmatprep.subr.bf16.mxu0 0
    %288 = vmatpush1.bf16.msra.mxu0 0
    %289 = vmatprep.subr.bf16.mxu0 0
    %290 = vmatpush1.bf16.msra.mxu0 0
    %291 = vmatprep.subr.bf16.mxu0 %v247
    %292 = vmatpush1.bf16.msra.mxu0 %v246
    %293 = vmatprep.subr.bf16.mxu0 %v243
    %294 = vmatpush1.bf16.msra.mxu0 %v242
    %295 = vmatprep.subr.bf16.mxu0 %v239
    %296 = vmatpush1.bf16.msra.mxu0 %v238
    %297 = vmatprep.subr.bf16.mxu0 %v235
    %298 = vmatpush1.bf16.msra.mxu0 %v234
    %299 = vmatprep.subr.bf16.mxu0 %v231
    %300 = vmatpush1.bf16.msra.mxu0 %v230
    %301 = vmatprep.subr.bf16.mxu0 %v227
    %302 = vmatpush1.bf16.msra.mxu0 %v226
    %303 = vmatprep.subr.bf16.mxu0 0
    %304 = vmatpush2.bf16.msra.mxu0 0
    %305 = vmatprep.subr.bf16.mxu0 0
    %306 = vmatpush2.bf16.msra.mxu0 0
    %307 = vmatprep.subr.bf16.mxu0 0
    %308 = vmatpush2.bf16.msra.mxu0 0
    %309 = vmatprep.subr.bf16.mxu0 0
    %310 = vmatpush2.bf16.msra.mxu0 0
    %311 = vmatprep.subr.bf16.mxu0 0
    %312 = vmatpush2.bf16.msra.mxu0 0
    %313 = vmatprep.subr.bf16.mxu0 0
    %314 = vmatpush2.bf16.msra.mxu0 0
    %315 = vmatprep.subr.bf16.mxu0 0
    %316 = vmatpush2.bf16.msra.mxu0 0
    %317 = vmatprep.subr.bf16.mxu0 0
    %318 = vmatpush2.bf16.msra.mxu0 0
    %319 = vmatprep.mubr.bf16.mxu0 0
    %320 = vmatmul.mubr.bf16.gmra.mxu0 %v276
    %v321 = vpop.f32.mrf.mxu0
    %v322 = vadd.f32 %v117, %v321
    %v323 = vpop.f32.mrf.mxu0
    %v324 = vadd.f32 %v121, %v323
    %v325 = vpop.f32.mrf.mxu0
    %v326 = vadd.f32 %v117, %v325
    %v327 = vpop.f32.mrf.mxu0
    %v328 = vadd.f32 %v121, %v327
    %329 = vmatprep.mubr.bf16.mxu0 0
    %330 = vmatmul.mubr.bf16.gmra.mxu0 %v279
    %v331 = vpop.f32.mrf.mxu0
    %v332 = vadd.f32 %v117, %v331
    %v333 = vpop.f32.mrf.mxu0
    %v334 = vadd.f32 %v121, %v333
    %v335 = vpop.f32.mrf.mxu0
    %v336 = vadd.f32 %v117, %v335
    %v337 = vpop.f32.mrf.mxu0
    %v338 = vadd.f32 %v121, %v337
    %339 = vmatprep.mubr.bf16.mxu0 0
    %340 = vmatmul.mubr.bf16.gmra.mxu0 %v282
    %v341 = vpop.f32.mrf.mxu0
    %v342 = vadd.f32 %v117, %v341
    %v343 = vpop.f32.mrf.mxu0
    %v344 = vadd.f32 %v121, %v343
    %v345 = vpop.f32.mrf.mxu0
    %v346 = vadd.f32 %v117, %v345
    %v347 = vpop.f32.mrf.mxu0
    %v348 = vadd.f32 %v121, %v347
    %349 = vmatprep.mubr.bf16.mxu0 0
    %350 = vmatmul.mubr.bf16.gmra.mxu0 %v285
    %v351 = vpop.f32.mrf.mxu0
    %v352 = vadd.f32 %v117, %v351
    %v353 = vpop.f32.mrf.mxu0
    %v354 = vadd.f32 %v121, %v353
    %v355 = vpop.f32.mrf.mxu0
    %v356 = vadd.f32 %v117, %v355
    %v357 = vpop.f32.mrf.mxu0
    %v358 = vadd.f32 %v121, %v357
    %359 = vdwg.mxu0
    %360 = vmatprep.subr.bf16.mxu0 0
    %361 = vmatpush1.bf16.msra.mxu0 0
    %362 = vmatprep.subr.bf16.mxu0 0
    %363 = vmatpush1.bf16.msra.mxu0 0
    %364 = vmatprep.subr.bf16.mxu0 %v249
    %365 = vmatpush1.bf16.msra.mxu0 %v248
    %366 = vmatprep.subr.bf16.mxu0 %v245
    %367 = vmatpush1.bf16.msra.mxu0 %v244
    %368 = vmatprep.subr.bf16.mxu0 %v241
    %369 = vmatpush1.bf16.msra.mxu0 %v240
    %370 = vmatprep.subr.bf16.mxu0 %v237
    %371 = vmatpush1.bf16.msra.mxu0 %v236
    %372 = vmatprep.subr.bf16.mxu0 %v233
    %373 = vmatpush1.bf16.msra.mxu0 %v232
    %374 = vmatprep.subr.bf16.mxu0 %v229
    %375 = vmatpush1.bf16.msra.mxu0 %v228
    %376 = vmatprep.subr.bf16.mxu0 0
    %377 = vmatpush2.bf16.msra.mxu0 0
    %378 = vmatprep.subr.bf16.mxu0 0
    %379 = vmatpush2.bf16.msra.mxu0 0
    %380 = vmatprep.subr.bf16.mxu0 0
    %381 = vmatpush2.bf16.msra.mxu0 0
    %382 = vmatprep.subr.bf16.mxu0 0
    %383 = vmatpush2.bf16.msra.mxu0 0
    %384 = vmatprep.subr.bf16.mxu0 0
    %385 = vmatpush2.bf16.msra.mxu0 0
    %386 = vmatprep.subr.bf16.mxu0 0
    %387 = vmatpush2.bf16.msra.mxu0 0
    %388 = vmatprep.subr.bf16.mxu0 0
    %389 = vmatpush2.bf16.msra.mxu0 0
    %390 = vmatprep.subr.bf16.mxu0 0
    %391 = vmatpush2.bf16.msra.mxu0 0
    %392 = vmatprep.mubr.bf16.mxu0 0
    %393 = vmatmul.mubr.bf16.gmra.mxu0 %v276
    %v394 = vpop.f32.mrf.mxu0
    %v395 = vadd.f32 %v125, %v394
    %v396 = vpop.f32.mrf.mxu0
    %v397 = vadd.f32 %v129, %v396
    %v398 = vpop.f32.mrf.mxu0
    %v399 = vadd.f32 %v125, %v398
    %v400 = vpop.f32.mrf.mxu0
    %v401 = vadd.f32 %v129, %v400
    %402 = vmatprep.mubr.bf16.mxu0 0
    %403 = vmatmul.mubr.bf16.gmra.mxu0 %v279
    %v404 = vpop.f32.mrf.mxu0
    %v405 = vadd.f32 %v125, %v404
    %v406 = vpop.f32.mrf.mxu0
    %v407 = vadd.f32 %v129, %v406
    %v408 = vpop.f32.mrf.mxu0
    %v409 = vadd.f32 %v125, %v408
    %v410 = vpop.f32.mrf.mxu0
    %v411 = vadd.f32 %v129, %v410
    %412 = vmatprep.mubr.bf16.mxu0 0
    %413 = vmatmul.mubr.bf16.gmra.mxu0 %v282
    %v414 = vpop.f32.mrf.mxu0
    %v415 = vadd.f32 %v125, %v414
    %v416 = vpop.f32.mrf.mxu0
    %v417 = vadd.f32 %v129, %v416
    %v418 = vpop.f32.mrf.mxu0
    %v419 = vadd.f32 %v125, %v418
    %v420 = vpop.f32.mrf.mxu0
    %v421 = vadd.f32 %v129, %v420
    %422 = vmatprep.mubr.bf16.mxu0 0
    %423 = vmatmul.mubr.bf16.gmra.mxu0 %v285
    %v424 = vpop.f32.mrf.mxu0
    %v425 = vadd.f32 %v125, %v424
    %v426 = vpop.f32.mrf.mxu0
    %v427 = vadd.f32 %v129, %v426
    %v428 = vpop.f32.mrf.mxu0
    %v429 = vadd.f32 %v125, %v428
    %v430 = vpop.f32.mrf.mxu0
    %v431 = vadd.f32 %v129, %v430
    %432 = vdwg.mxu0
    %433 = vst [vmem:[#allocation2] sm:$0xff] %v322
    %434 = vst [vmem:[#allocation2 + $0x8] sm:$0xff] %v324
    %435 = vst [vmem:[#allocation2 + $0x10] sm:$0xff] %v395
    %436 = vst [vmem:[#allocation2 + $0x18] sm:$0xff] %v397
    %437 = vst [vmem:[#allocation2 + $0x20] sm:$0xff] %v326
    %438 = vst [vmem:[#allocation2 + $0x28] sm:$0xff] %v328
    %439 = vst [vmem:[#allocation2 + $0x30] sm:$0xff] %v399
    %440 = vst [vmem:[#allocation2 + $0x38] sm:$0xff] %v401
    %441 = vst [vmem:[#allocation2 + $0x40] sm:$0xff] %v332
    %442 = vst [vmem:[#allocation2 + $0x48] sm:$0xff] %v334
    %443 = vst [vmem:[#allocation2 + $0x50] sm:$0xff] %v405
    %444 = vst [vmem:[#allocation2 + $0x58] sm:$0xff] %v407
    %445 = vst [vmem:[#allocation2 + $0x60] sm:$0xff] %v336
    %446 = vst [vmem:[#allocation2 + $0x68] sm:$0xff] %v338
    %447 = vst [vmem:[#allocation2 + $0x70] sm:$0xff] %v409
    %448 = vst [vmem:[#allocation2 + $0x78] sm:$0xff] %v411
    %449 = vst [vmem:[#allocation2 + $0x80] sm:$0xff] %v342
    %450 = vst [vmem:[#allocation2 + $0x88] sm:$0xff] %v344
    %451 = vst [vmem:[#allocation2 + $0x90] sm:$0xff] %v415
    %452 = vst [vmem:[#allocation2 + $0x98] sm:$0xff] %v417
    %453 = vst [vmem:[#allocation2 + $0xa0] sm:$0xff] %v346
    %454 = vst [vmem:[#allocation2 + $0xa8] sm:$0xff] %v348
    %455 = vst [vmem:[#allocation2 + $0xb0] sm:$0xff] %v419
    %456 = vst [vmem:[#allocation2 + $0xb8] sm:$0xff] %v421
    %457 = vst [vmem:[#allocation2 + $0xc0] sm:$0xff] %v352
    %458 = vst [vmem:[#allocation2 + $0xc8] sm:$0xff] %v354
    %459 = vst [vmem:[#allocation2 + $0xd0] sm:$0xff] %v425
    %460 = vst [vmem:[#allocation2 + $0xd8] sm:$0xff] %v427
    %461 = vst [vmem:[#allocation2 + $0xe0] sm:$0xff] %v356
    %462 = vst [vmem:[#allocation2 + $0xe8] sm:$0xff] %v358
    %463 = vst [vmem:[#allocation2 + $0xf0] sm:$0xff] %v429
    %464 = vst [vmem:[#allocation2 + $0xf8] sm:$0xff] %v431
    %v465 = vld [vmem:[#allocation8] sm:$0xff]
    %v466 = vld [vmem:[#allocation8 + $0x8] sm:$0xff]
    %v467 = vld [vmem:[#allocation8 + $0x10] sm:$0xff]
    %v468 = vld [vmem:[#allocation8 + $0x18] sm:$0xff]
    %v469 = vld [vmem:[#allocation8 + $0x20] sm:$0xff]
    %v470 = vld [vmem:[#allocation8 + $0x28] sm:$0xff]
    %v471 = vld [vmem:[#allocation8 + $0x30] sm:$0xff]
    %v472 = vld [vmem:[#allocation8 + $0x38] sm:$0xff]
    %v473 = vld [vmem:[#allocation8 + $0x40] sm:$0xff]
    %v474 = vld [vmem:[#allocation8 + $0x48] sm:$0xff]
    %v475 = vld [vmem:[#allocation8 + $0x50] sm:$0xff]
    %v476 = vld [vmem:[#allocation8 + $0x58] sm:$0xff]
    %v477 = vld [vmem:[#allocation8 + $0x60] sm:$0xff]
    %v478 = vld [vmem:[#allocation8 + $0x68] sm:$0xff]
    %v479 = vld [vmem:[#allocation8 + $0x70] sm:$0xff]
    %v480 = vld [vmem:[#allocation8 + $0x78] sm:$0xff]
    %v481 = vld [vmem:[#allocation8 + $0x80] sm:$0xff]
    %v482 = vld [vmem:[#allocation8 + $0x88] sm:$0xff]
    %v483 = vld [vmem:[#allocation8 + $0x90] sm:$0xff]
    %v484 = vld [vmem:[#allocation8 + $0x98] sm:$0xff]
    %v485 = vld [vmem:[#allocation8 + $0xa0] sm:$0xff]
    %v486 = vld [vmem:[#allocation8 + $0xa8] sm:$0xff]
    %v487 = vld [vmem:[#allocation8 + $0xb0] sm:$0xff]
    %v488 = vld [vmem:[#allocation8 + $0xb8] sm:$0xff]
    %v489 = vld [vmem:[#allocation8 + $0xc0] sm:$0xff]
    %v490 = vld [vmem:[#allocation8 + $0xc8] sm:$0xff]
    %v491 = vld [vmem:[#allocation8 + $0xd0] sm:$0xff]
    %v492 = vld [vmem:[#allocation8 + $0xd8] sm:$0xff]
    %v493 = vld [vmem:[#allocation8 + $0xe0] sm:$0xff]
    %v494 = vld [vmem:[#allocation8 + $0xe8] sm:$0xff]
    %v495 = vld [vmem:[#allocation8 + $0xf0] sm:$0xff]
    %v496 = vld [vmem:[#allocation8 + $0xf8] sm:$0xff]
    %v497 = vld [vmem:[#allocation2] sm:$0xff]
    %v498 = vld [vmem:[#allocation2 + $0x8] sm:$0xff]
    %v499 = vld [vmem:[#allocation2 + $0x10] sm:$0xff]
    %v500 = vld [vmem:[#allocation2 + $0x18] sm:$0xff]
    %v533 = vunpack.c.l.b16 %v465
    %v534 = vunpack.c.h.b16 %v465
    %v535 = vunpack.c.l.b16 %v466
    %v536 = vunpack.c.h.b16 %v466
    %v537 = vunpack.c.l.b16 %v467
    %v538 = vunpack.c.h.b16 %v467
    %v539 = vunpack.c.l.b16 %v468
    %v540 = vunpack.c.h.b16 %v468
    %v541 = vunpack.c.l.b16 %v469
    %v542 = vunpack.c.h.b16 %v469
    %v543 = vunpack.c.l.b16 %v470
    %v544 = vunpack.c.h.b16 %v470
    %v545 = vunpack.c.l.b16 %v471
    %v546 = vunpack.c.h.b16 %v471
    %v547 = vunpack.c.l.b16 %v472
    %v548 = vunpack.c.h.b16 %v472
    %v549 = vunpack.c.l.b16 %v473
    %v550 = vunpack.c.h.b16 %v473
    %v551 = vunpack.c.l.b16 %v474
    %v552 = vunpack.c.h.b16 %v474
    %v553 = vunpack.c.l.b16 %v475
    %v554 = vunpack.c.h.b16 %v475
    %v555 = vunpack.c.l.b16 %v476
    %v556 = vunpack.c.h.b16 %v476
    %v557 = vunpack.c.l.b16 %v477
    %v558 = vunpack.c.h.b16 %v477
    %v559 = vunpack.c.l.b16 %v478
    %v560 = vunpack.c.h.b16 %v478
    %v561 = vunpack.c.l.b16 %v479
    %v562 = vunpack.c.h.b16 %v479
    %v563 = vunpack.c.l.b16 %v480
    %v564 = vunpack.c.h.b16 %v480
    %v565 = vunpack.c.l.b16 %v481
    %v566 = vunpack.c.h.b16 %v481
    %v567 = vunpack.c.l.b16 %v482
    %v568 = vunpack.c.h.b16 %v482
    %v569 = vunpack.c.l.b16 %v483
    %v570 = vunpack.c.h.b16 %v483
    %v571 = vunpack.c.l.b16 %v484
    %v572 = vunpack.c.h.b16 %v484
    %v573 = vunpack.c.l.b16 %v485
    %v574 = vunpack.c.h.b16 %v485
    %v575 = vunpack.c.l.b16 %v486
    %v576 = vunpack.c.h.b16 %v486
    %v577 = vunpack.c.l.b16 %v487
    %v578 = vunpack.c.h.b16 %v487
    %v579 = vunpack.c.l.b16 %v488
    %v580 = vunpack.c.h.b16 %v488
    %v581 = vunpack.c.l.b16 %v489
    %v582 = vunpack.c.h.b16 %v489
    %v583 = vunpack.c.l.b16 %v490
    %v584 = vunpack.c.h.b16 %v490
    %v585 = vunpack.c.l.b16 %v491
    %v586 = vunpack.c.h.b16 %v491
    %v587 = vunpack.c.l.b16 %v492
    %v588 = vunpack.c.h.b16 %v492
    %v589 = vunpack.c.l.b16 %v493
    %v590 = vunpack.c.h.b16 %v493
    %v591 = vunpack.c.l.b16 %v494
    %v592 = vunpack.c.h.b16 %v494
    %v593 = vunpack.c.l.b16 %v495
    %v594 = vunpack.c.h.b16 %v495
    %v595 = vunpack.c.l.b16 %v496
    %v596 = vunpack.c.h.b16 %v496
    %v597 = vpack.c.b16 %v537, %v533
    %v598 = vpack.c.b16 %v538, %v534
    %v599 = vpack.c.b16 %v539, %v535
    %v600 = vpack.c.b16 %v540, %v536
    %v601 = vpack.c.b16 %v545, %v541
    %v602 = vpack.c.b16 %v546, %v542
    %v603 = vpack.c.b16 %v547, %v543
    %v604 = vpack.c.b16 %v548, %v544
    %v605 = vpack.c.b16 %v553, %v549
    %v606 = vpack.c.b16 %v554, %v550
    %v607 = vpack.c.b16 %v555, %v551
    %v608 = vpack.c.b16 %v556, %v552
    %v609 = vpack.c.b16 %v561, %v557
    %v610 = vpack.c.b16 %v562, %v558
    %v611 = vpack.c.b16 %v563, %v559
    %v612 = vpack.c.b16 %v564, %v560
    %v613 = vpack.c.b16 %v569, %v565
    %v614 = vpack.c.b16 %v570, %v566
    %v615 = vpack.c.b16 %v571, %v567
    %v616 = vpack.c.b16 %v572, %v568
    %v617 = vpack.c.b16 %v577, %v573
    %v618 = vpack.c.b16 %v578, %v574
    %v619 = vpack.c.b16 %v579, %v575
    %v620 = vpack.c.b16 %v580, %v576
    %v621 = vpack.c.b16 %v585, %v581
    %v622 = vpack.c.b16 %v586, %v582
    %v623 = vpack.c.b16 %v587, %v583
    %v624 = vpack.c.b16 %v588, %v584
    %v625 = vpack.c.b16 %v593, %v589
    %v626 = vpack.c.b16 %v594, %v590
    %v627 = vpack.c.b16 %v595, %v591
    %v628 = vpack.c.b16 %v596, %v592
    %661 = vmatprep.subr.bf16.mxu0 %v626
    %662 = vmatpush1.bf16.msra.mxu0 %v625
    %663 = vmatprep.subr.bf16.mxu0 %v622
    %664 = vmatpush1.bf16.msra.mxu0 %v621
    %665 = vmatprep.subr.bf16.mxu0 %v618
    %666 = vmatpush1.bf16.msra.mxu0 %v617
    %667 = vmatprep.subr.bf16.mxu0 %v614
    %668 = vmatpush1.bf16.msra.mxu0 %v613
    %669 = vmatprep.subr.bf16.mxu0 %v610
    %670 = vmatpush1.bf16.msra.mxu0 %v609
    %671 = vmatprep.subr.bf16.mxu0 %v606
    %672 = vmatpush1.bf16.msra.mxu0 %v605
    %673 = vmatprep.subr.bf16.mxu0 %v602
    %674 = vmatpush1.bf16.msra.mxu0 %v601
    %675 = vmatprep.subr.bf16.mxu0 %v598
    %676 = vmatpush1.bf16.msra.mxu0 %v597
    %677 = vmatprep.subr.bf16.mxu0 0
    %678 = vmatpush2.bf16.msra.mxu0 0
    %679 = vmatprep.subr.bf16.mxu0 0
    %680 = vmatpush2.bf16.msra.mxu0 0
    %681 = vmatprep.subr.bf16.mxu0 0
    %682 = vmatpush2.bf16.msra.mxu0 0
    %683 = vmatprep.subr.bf16.mxu0 0
    %684 = vmatpush2.bf16.msra.mxu0 0
    %685 = vmatprep.subr.bf16.mxu0 0
    %686 = vmatpush2.bf16.msra.mxu0 0
    %687 = vmatprep.subr.bf16.mxu0 0
    %688 = vmatpush2.bf16.msra.mxu0 0
    %689 = vmatprep.subr.bf16.mxu0 0
    %690 = vmatpush2.bf16.msra.mxu0 0
    %691 = vmatprep.subr.bf16.mxu0 0
    %692 = vmatpush2.bf16.msra.mxu0 0
    %693 = vmatprep.mubr.bf16.mxu0 0
    %694 = vmatmul.mubr.bf16.gmra.mxu0 0
    %v695 = vpop.f32.mrf.mxu0
    %v696 = vadd.f32 0.0, %v695
    %v697 = vpop.f32.mrf.mxu0
    %v698 = vadd.f32 0.0, %v697
    %v699 = vpop.f32.mrf.mxu0
    %v700 = vpop.f32.mrf.mxu0
    %701 = vdwg.mxu0
    %702 = vmatprep.subr.bf16.mxu0 %v628
    %703 = vmatpush1.bf16.msra.mxu0 %v627
    %704 = vmatprep.subr.bf16.mxu0 %v624
    %705 = vmatpush1.bf16.msra.mxu0 %v623
    %706 = vmatprep.subr.bf16.mxu0 %v620
    %707 = vmatpush1.bf16.msra.mxu0 %v619
    %708 = vmatprep.subr.bf16.mxu0 %v616
    %709 = vmatpush1.bf16.msra.mxu0 %v615
    %710 = vmatprep.subr.bf16.mxu0 %v612
    %711 = vmatpush1.bf16.msra.mxu0 %v611
    %712 = vmatprep.subr.bf16.mxu0 %v608
    %713 = vmatpush1.bf16.msra.mxu0 %v607
    %714 = vmatprep.subr.bf16.mxu0 %v604
    %715 = vmatpush1.bf16.msra.mxu0 %v603
    %716 = vmatprep.subr.bf16.mxu0 %v600
    %717 = vmatpush1.bf16.msra.mxu0 %v599
    %718 = vmatprep.subr.bf16.mxu0 0
    %719 = vmatpush2.bf16.msra.mxu0 0
    %720 = vmatprep.subr.bf16.mxu0 0
    %721 = vmatpush2.bf16.msra.mxu0 0
    %722 = vmatprep.subr.bf16.mxu0 0
    %723 = vmatpush2.bf16.msra.mxu0 0
    %724 = vmatprep.subr.bf16.mxu0 0
    %725 = vmatpush2.bf16.msra.mxu0 0
    %726 = vmatprep.subr.bf16.mxu0 0
    %727 = vmatpush2.bf16.msra.mxu0 0
    %728 = vmatprep.subr.bf16.mxu0 0
    %729 = vmatpush2.bf16.msra.mxu0 0
    %730 = vmatprep.subr.bf16.mxu0 0
    %731 = vmatpush2.bf16.msra.mxu0 0
    %732 = vmatprep.subr.bf16.mxu0 0
    %733 = vmatpush2.bf16.msra.mxu0 0
    %734 = vmatprep.mubr.bf16.mxu0 0
    %735 = vmatmul.mubr.bf16.gmra.mxu0 0
    %v736 = vpop.f32.mrf.mxu0
    %v737 = vadd.f32 0.0, %v736
    %v738 = vpop.f32.mrf.mxu0
    %v739 = vadd.f32 0.0, %v738
    %v740 = vpop.f32.mrf.mxu0
    %v741 = vpop.f32.mrf.mxu0
    %742 = vdwg.mxu0
    %v743 = vadd.f32 %v497, %v696
    %v744 = vadd.f32 %v498, %v698
    %v745 = vadd.f32 %v499, %v737
    %v746 = vadd.f32 %v500, %v739
    %v747 = vxor.u32 %v743, 2147483648
    %v748 = vmul.f32 %v747, 1.442695
    %v749 = vpow.pop %v748
    %v750 = vadd.f32 %v749, 1.0
    %v751 = vrcp.pop %v750
    %v752 = vmul.f32 1.0, %v751
    %v753 = vxor.u32 %v744, 2147483648
    %v754 = vmul.f32 %v753, 1.442695
    %v755 = vpow.pop %v754
    %v756 = vadd.f32 %v755, 1.0
    %v757 = vrcp.pop %v756
    %v758 = vmul.f32 1.0, %v757
    %v759 = vtanh.pop %v745
    %v760 = vxor.u32 %v746, 2147483648
    %v761 = vmul.f32 %v760, 1.442695
    %v762 = vpow.pop %v761
    %v763 = vadd.f32 %v762, 1.0
    %v764 = vrcp.pop %v763
    %v765 = vmul.f32 1.0, %v764
    %v766 = vmul.f32 %v758, 0.0
    %v767 = vmul.f32 %v752, %v759
    %v768 = vadd.f32 %v766, %v767
    %v769 = vtanh.pop %v768
    %v770 = vmul.f32 %v765, %v769
    %v771 = vld [vmem:[#allocation2 + $0x20] sm:$0xff]
    %v772 = vld [vmem:[#allocation2 + $0x28] sm:$0xff]
    %v773 = vld [vmem:[#allocation2 + $0x30] sm:$0xff]
    %v774 = vld [vmem:[#allocation2 + $0x38] sm:$0xff]
    %v775 = vpack.c.bf16 %v770, %v770
    %776 = vmatprep.subr.bf16.mxu0 %v626
    %777 = vmatpush1.bf16.msra.mxu0 %v625
    %778 = vmatprep.subr.bf16.mxu0 %v622
    %779 = vmatpush1.bf16.msra.mxu0 %v621
    %780 = vmatprep.subr.bf16.mxu0 %v618
    %781 = vmatpush1.bf16.msra.mxu0 %v617
    %782 = vmatprep.subr.bf16.mxu0 %v614
    %783 = vmatpush1.bf16.msra.mxu0 %v613
    %784 = vmatprep.subr.bf16.mxu0 %v610
    %785 = vmatpush1.bf16.msra.mxu0 %v609
    %786 = vmatprep.subr.bf16.mxu0 %v606
    %787 = vmatpush1.bf16.msra.mxu0 %v605
    %788 = vmatprep.subr.bf16.mxu0 %v602
    %789 = vmatpush1.bf16.msra.mxu0 %v601
    %790 = vmatprep.subr.bf16.mxu0 %v598
    %791 = vmatpush1.bf16.msra.mxu0 %v597
    %792 = vmatprep.subr.bf16.mxu0 0
    %793 = vmatpush2.bf16.msra.mxu0 0
    %794 = vmatprep.subr.bf16.mxu0 0
    %795 = vmatpush2.bf16.msra.mxu0 0
    %796 = vmatprep.subr.bf16.mxu0 0
    %797 = vmatpush2.bf16.msra.mxu0 0
    %798 = vmatprep.subr.bf16.mxu0 0
    %799 = vmatpush2.bf16.msra.mxu0 0
    %800 = vmatprep.subr.bf16.mxu0 0
    %801 = vmatpush2.bf16.msra.mxu0 0
    %802 = vmatprep.subr.bf16.mxu0 0
    %803 = vmatpush2.bf16.msra.mxu0 0
    %804 = vmatprep.subr.bf16.mxu0 0
    %805 = vmatpush2.bf16.msra.mxu0 0
    %806 = vmatprep.subr.bf16.mxu0 0
    %807 = vmatpush2.bf16.msra.mxu0 0
    %808 = vmatprep.mubr.bf16.mxu0 0
    %809 = vmatmul.mubr.bf16.gmra.mxu0 %v775
    %v810 = vpop.f32.mrf.mxu0
    %v811 = vadd.f32 0.0, %v810
    %v812 = vpop.f32.mrf.mxu0
    %v813 = vadd.f32 0.0, %v812
    %v814 = vpop.f32.mrf.mxu0
    %v815 = vpop.f32.mrf.mxu0
    %816 = vdwg.mxu0
    %817 = vmatprep.subr.bf16.mxu0 %v628
    %818 = vmatpush1.bf16.msra.mxu0 %v627
    %819 = vmatprep.subr.bf16.mxu0 %v624
    %820 = vmatpush1.bf16.msra.mxu0 %v623
    %821 = vmatprep.subr.bf16.mxu0 %v620
    %822 = vmatpush1.bf16.msra.mxu0 %v619
    %823 = vmatprep.subr.bf16.mxu0 %v616
    %824 = vmatpush1.bf16.msra.mxu0 %v615
    %825 = vmatprep.subr.bf16.mxu0 %v612
    %826 = vmatpush1.bf16.msra.mxu0 %v611
    %827 = vmatprep.subr.bf16.mxu0 %v608
    %828 = vmatpush1.bf16.msra.mxu0 %v607
    %829 = vmatprep.subr.bf16.mxu0 %v604
    %830 = vmatpush1.bf16.msra.mxu0 %v603
    %831 = vmatprep.subr.bf16.mxu0 %v600
    %832 = vmatpush1.bf16.msra.mxu0 %v599
    %833 = vmatprep.subr.bf16.mxu0 0
    %834 = vmatpush2.bf16.msra.mxu0 0
    %835 = vmatprep.subr.bf16.mxu0 0
    %836 = vmatpush2.bf16.msra.mxu0 0
    %837 = vmatprep.subr.bf16.mxu0 0
    %838 = vmatpush2.bf16.msra.mxu0 0
    %839 = vmatprep.subr.bf16.mxu0 0
    %840 = vmatpush2.bf16.msra.mxu0 0
    %841 = vmatprep.subr.bf16.mxu0 0
    %842 = vmatpush2.bf16.msra.mxu0 0
    %843 = vmatprep.subr.bf16.mxu0 0
    %844 = vmatpush2.bf16.msra.mxu0 0
    %845 = vmatprep.subr.bf16.mxu0 0
    %846 = vmatpush2.bf16.msra.mxu0 0
    %847 = vmatprep.subr.bf16.mxu0 0
    %848 = vmatpush2.bf16.msra.mxu0 0
    %849 = vmatprep.mubr.bf16.mxu0 0
    %850 = vmatmul.mubr.bf16.gmra.mxu0 %v775
    %v851 = vpop.f32.mrf.mxu0
    %v852 = vadd.f32 0.0, %v851
    %v853 = vpop.f32.mrf.mxu0
    %v854 = vadd.f32 0.0, %v853
    %v855 = vpop.f32.mrf.mxu0
    %v856 = vpop.f32.mrf.mxu0
    %857 = vdwg.mxu0
    %v858 = vadd.f32 %v771, %v811
    %v859 = vadd.f32 %v772, %v813
    %v860 = vadd.f32 %v773, %v852
    %v861 = vadd.f32 %v774, %v854
    %v862 = vxor.u32 %v858, 2147483648
    %v863 = vmul.f32 %v862, 1.442695
    %v864 = vpow.pop %v863
    %v865 = vadd.f32 %v864, 1.0
    %v866 = vrcp.pop %v865
    %v867 = vmul.f32 1.0, %v866
    %v868 = vxor.u32 %v859, 2147483648
    %v869 = vmul.f32 %v868, 1.442695
    %v870 = vpow.pop %v869
    %v871 = vadd.f32 %v870, 1.0
    %v872 = vrcp.pop %v871
    %v873 = vmul.f32 1.0, %v872
    %v874 = vtanh.pop %v860
    %v875 = vxor.u32 %v861, 2147483648
    %v876 = vmul.f32 %v875, 1.442695
    %v877 = vpow.pop %v876
    %v878 = vadd.f32 %v877, 1.0
    %v879 = vrcp.pop %v878
    %v880 = vmul.f32 1.0, %v879
    %v881 = vmul.f32 %v873, %v768
    %v882 = vmul.f32 %v867, %v874
    %v883 = vadd.f32 %v881, %v882
    %v884 = vtanh.pop %v883
    %v885 = vmul.f32 %v880, %v884
    %v886 = vld [vmem:[#allocation2 + $0x40] sm:$0xff]
    %v887 = vld [vmem:[#allocation2 + $0x48] sm:$0xff]
    %v888 = vld [vmem:[#allocation2 + $0x50] sm:$0xff]
    %v889 = vld [vmem:[#allocation2 + $0x58] sm:$0xff]
    %v890 = vpack.c.bf16 %v885, %v885
    %891 = vmatprep.subr.bf16.mxu0 %v626
    %892 = vmatpush1.bf16.msra.mxu0 %v625
    %893 = vmatprep.subr.bf16.mxu0 %v622
    %894 = vmatpush1.bf16.msra.mxu0 %v621
    %895 = vmatprep.subr.bf16.mxu0 %v618
    %896 = vmatpush1.bf16.msra.mxu0 %v617
    %897 = vmatprep.subr.bf16.mxu0 %v614
    %898 = vmatpush1.bf16.msra.mxu0 %v613
    %899 = vmatprep.subr.bf16.mxu0 %v610
    %900 = vmatpush1.bf16.msra.mxu0 %v609
    %901 = vmatprep.subr.bf16.mxu0 %v606
    %902 = vmatpush1.bf16.msra.mxu0 %v605
    %903 = vmatprep.subr.bf16.mxu0 %v602
    %904 = vmatpush1.bf16.msra.mxu0 %v601
    %905 = vmatprep.subr.bf16.mxu0 %v598
    %906 = vmatpush1.bf16.msra.mxu0 %v597
    %907 = vmatprep.subr.bf16.mxu0 0
    %908 = vmatpush2.bf16.msra.mxu0 0
    %909 = vmatprep.subr.bf16.mxu0 0
    %910 = vmatpush2.bf16.msra.mxu0 0
    %911 = vmatprep.subr.bf16.mxu0 0
    %912 = vmatpush2.bf16.msra.mxu0 0
    %913 = vmatprep.subr.bf16.mxu0 0
    %914 = vmatpush2.bf16.msra.mxu0 0
    %915 = vmatprep.subr.bf16.mxu0 0
    %916 = vmatpush2.bf16.msra.mxu0 0
    %917 = vmatprep.subr.bf16.mxu0 0
    %918 = vmatpush2.bf16.msra.mxu0 0
    %919 = vmatprep.subr.bf16.mxu0 0
    %920 = vmatpush2.bf16.msra.mxu0 0
    %921 = vmatprep.subr.bf16.mxu0 0
    %922 = vmatpush2.bf16.msra.mxu0 0
    %923 = vmatprep.mubr.bf16.mxu0 0
    %924 = vmatmul.mubr.bf16.gmra.mxu0 %v890
    %v925 = vpop.f32.mrf.mxu0
    %v926 = vadd.f32 0.0, %v925
    %v927 = vpop.f32.mrf.mxu0
    %v928 = vadd.f32 0.0, %v927
    %v929 = vpop.f32.mrf.mxu0
    %v930 = vpop.f32.mrf.mxu0
    %931 = vdwg.mxu0
    %932 = vmatprep.subr.bf16.mxu0 %v628
    %933 = vmatpush1.bf16.msra.mxu0 %v627
    %934 = vmatprep.subr.bf16.mxu0 %v624
    %935 = vmatpush1.bf16.msra.mxu0 %v623
    %936 = vmatprep.subr.bf16.mxu0 %v620
    %937 = vmatpush1.bf16.msra.mxu0 %v619
    %938 = vmatprep.subr.bf16.mxu0 %v616
    %939 = vmatpush1.bf16.msra.mxu0 %v615
    %940 = vmatprep.subr.bf16.mxu0 %v612
    %941 = vmatpush1.bf16.msra.mxu0 %v611
    %942 = vmatprep.subr.bf16.mxu0 %v608
    %943 = vmatpush1.bf16.msra.mxu0 %v607
    %944 = vmatprep.subr.bf16.mxu0 %v604
    %945 = vmatpush1.bf16.msra.mxu0 %v603
    %946 = vmatprep.subr.bf16.mxu0 %v600
    %947 = vmatpush1.bf16.msra.mxu0 %v599
    %948 = vmatprep.subr.bf16.mxu0 0
    %949 = vmatpush2.bf16.msra.mxu0 0
    %950 = vmatprep.subr.bf16.mxu0 0
    %951 = vmatpush2.bf16.msra.mxu0 0
    %952 = vmatprep.subr.bf16.mxu0 0
    %953 = vmatpush2.bf16.msra.mxu0 0
    %954 = vmatprep.subr.bf16.mxu0 0
    %955 = vmatpush2.bf16.msra.mxu0 0
    %956 = vmatprep.subr.bf16.mxu0 0
    %957 = vmatpush2.bf16.msra.mxu0 0
    %958 = vmatprep.subr.bf16.mxu0 0
    %959 = vmatpush2.bf16.msra.mxu0 0
    %960 = vmatprep.subr.bf16.mxu0 0
    %961 = vmatpush2.bf16.msra.mxu0 0
    %962 = vmatprep.subr.bf16.mxu0 0
    %963 = vmatpush2.bf16.msra.mxu0 0
    %964 = vmatprep.mubr.bf16.mxu0 0
    %965 = vmatmul.mubr.bf16.gmra.mxu0 %v890
    %v966 = vpop.f32.mrf.mxu0
    %v967 = vadd.f32 0.0, %v966
    %v968 = vpop.f32.mrf.mxu0
    %v969 = vadd.f32 0.0, %v968
    %v970 = vpop.f32.mrf.mxu0
    %v971 = vpop.f32.mrf.mxu0
    %972 = vdwg.mxu0
    %v973 = vadd.f32 %v886, %v926
    %v974 = vadd.f32 %v887, %v928
    %v975 = vadd.f32 %v888, %v967
    %v976 = vadd.f32 %v889, %v969
    %v977 = vxor.u32 %v973, 2147483648
    %v978 = vmul.f32 %v977, 1.442695
    %v979 = vpow.pop %v978
    %v980 = vadd.f32 %v979, 1.0
    %v981 = vrcp.pop %v980
    %v982 = vmul.f32 1.0, %v981
    %v983 = vxor.u32 %v974, 2147483648
    %v984 = vmul.f32 %v983, 1.442695
    %v985 = vpow.pop %v984
    %v986 = vadd.f32 %v985, 1.0
    %v987 = vrcp.pop %v986
    %v988 = vmul.f32 1.0, %v987
    %v989 = vtanh.pop %v975
    %v990 = vxor.u32 %v976, 2147483648
    %v991 = vmul.f32 %v990, 1.442695
    %v992 = vpow.pop %v991
    %v993 = vadd.f32 %v992, 1.0
    %v994 = vrcp.pop %v993
    %v995 = vmul.f32 1.0, %v994
    %v996 = vmul.f32 %v988, %v883
    %v997 = vmul.f32 %v982, %v989
    %v998 = vadd.f32 %v996, %v997
    %v999 = vtanh.pop %v998
    %v1000 = vmul.f32 %v995, %v999
    %v1001 = vld [vmem:[#allocation2 + $0x60] sm:$0xff]
    %v1002 = vld [vmem:[#allocation2 + $0x68] sm:$0xff]
    %v1003 = vld [vmem:[#allocation2 + $0x70] sm:$0xff]
    %v1004 = vld [vmem:[#allocation2 + $0x78] sm:$0xff]
    %v1005 = vpack.c.bf16 %v1000, %v1000
    %1006 = vmatprep.subr.bf16.mxu0 %v626
    %1007 = vmatpush1.bf16.msra.mxu0 %v625
    %1008 = vmatprep.subr.bf16.mxu0 %v622
    %1009 = vmatpush1.bf16.msra.mxu0 %v621
    %1010 = vmatprep.subr.bf16.mxu0 %v618
    %1011 = vmatpush1.bf16.msra.mxu0 %v617
    %1012 = vmatprep.subr.bf16.mxu0 %v614
    %1013 = vmatpush1.bf16.msra.mxu0 %v613
    %1014 = vmatprep.subr.bf16.mxu0 %v610
    %1015 = vmatpush1.bf16.msra.mxu0 %v609
    %1016 = vmatprep.subr.bf16.mxu0 %v606
    %1017 = vmatpush1.bf16.msra.mxu0 %v605
    %1018 = vmatprep.subr.bf16.mxu0 %v602
    %1019 = vmatpush1.bf16.msra.mxu0 %v601
    %1020 = vmatprep.subr.bf16.mxu0 %v598
    %1021 = vmatpush1.bf16.msra.mxu0 %v597
    %1022 = vmatprep.subr.bf16.mxu0 0
    %1023 = vmatpush2.bf16.msra.mxu0 0
    %1024 = vmatprep.subr.bf16.mxu0 0
    %1025 = vmatpush2.bf16.msra.mxu0 0
    %1026 = vmatprep.subr.bf16.mxu0 0
    %1027 = vmatpush2.bf16.msra.mxu0 0
    %1028 = vmatprep.subr.bf16.mxu0 0
    %1029 = vmatpush2.bf16.msra.mxu0 0
    %1030 = vmatprep.subr.bf16.mxu0 0
    %1031 = vmatpush2.bf16.msra.mxu0 0
    %1032 = vmatprep.subr.bf16.mxu0 0
    %1033 = vmatpush2.bf16.msra.mxu0 0
    %1034 = vmatprep.subr.bf16.mxu0 0
    %1035 = vmatpush2.bf16.msra.mxu0 0
    %1036 = vmatprep.subr.bf16.mxu0 0
    %1037 = vmatpush2.bf16.msra.mxu0 0
    %1038 = vmatprep.mubr.bf16.mxu0 0
    %1039 = vmatmul.mubr.bf16.gmra.mxu0 %v1005
    %v1040 = vpop.f32.mrf.mxu0
    %v1041 = vadd.f32 0.0, %v1040
    %v1042 = vpop.f32.mrf.mxu0
    %v1043 = vadd.f32 0.0, %v1042
    %v1044 = vpop.f32.mrf.mxu0
    %v1045 = vpop.f32.mrf.mxu0
    %1046 = vdwg.mxu0
    %1047 = vmatprep.subr.bf16.mxu0 %v628
    %1048 = vmatpush1.bf16.msra.mxu0 %v627
    %1049 = vmatprep.subr.bf16.mxu0 %v624
    %1050 = vmatpush1.bf16.msra.mxu0 %v623
    %1051 = vmatprep.subr.bf16.mxu0 %v620
    %1052 = vmatpush1.bf16.msra.mxu0 %v619
    %1053 = vmatprep.subr.bf16.mxu0 %v616
    %1054 = vmatpush1.bf16.msra.mxu0 %v615
    %1055 = vmatprep.subr.bf16.mxu0 %v612
    %1056 = vmatpush1.bf16.msra.mxu0 %v611
    %1057 = vmatprep.subr.bf16.mxu0 %v608
    %1058 = vmatpush1.bf16.msra.mxu0 %v607
    %1059 = vmatprep.subr.bf16.mxu0 %v604
    %1060 = vmatpush1.bf16.msra.mxu0 %v603
    %1061 = vmatprep.subr.bf16.mxu0 %v600
    %1062 = vmatpush1.bf16.msra.mxu0 %v599
    %1063 = vmatprep.subr.bf16.mxu0 0
    %1064 = vmatpush2.bf16.msra.mxu0 0
    %1065 = vmatprep.subr.bf16.mxu0 0
    %1066 = vmatpush2.bf16.msra.mxu0 0
    %1067 = vmatprep.subr.bf16.mxu0 0
    %1068 = vmatpush2.bf16.msra.mxu0 0
    %1069 = vmatprep.subr.bf16.mxu0 0
    %1070 = vmatpush2.bf16.msra.mxu0 0
    %1071 = vmatprep.subr.bf16.mxu0 0
    %1072 = vmatpush2.bf16.msra.mxu0 0
    %1073 = vmatprep.subr.bf16.mxu0 0
    %1074 = vmatpush2.bf16.msra.mxu0 0
    %1075 = vmatprep.subr.bf16.mxu0 0
    %1076 = vmatpush2.bf16.msra.mxu0 0
    %1077 = vmatprep.subr.bf16.mxu0 0
    %1078 = vmatpush2.bf16.msra.mxu0 0
    %1079 = vmatprep.mubr.bf16.mxu0 0
    %1080 = vmatmul.mubr.bf16.gmra.mxu0 %v1005
    %v1081 = vpop.f32.mrf.mxu0
    %v1082 = vadd.f32 0.0, %v1081
    %v1083 = vpop.f32.mrf.mxu0
    %v1084 = vadd.f32 0.0, %v1083
    %v1085 = vpop.f32.mrf.mxu0
    %v1086 = vpop.f32.mrf.mxu0
    %1087 = vdwg.mxu0
    %v1088 = vadd.f32 %v1001, %v1041
    %v1089 = vadd.f32 %v1002, %v1043
    %v1090 = vadd.f32 %v1003, %v1082
    %v1091 = vadd.f32 %v1004, %v1084
    %v1092 = vxor.u32 %v1088, 2147483648
    %v1093 = vmul.f32 %v1092, 1.442695
    %v1094 = vpow.pop %v1093
    %v1095 = vadd.f32 %v1094, 1.0
    %v1096 = vrcp.pop %v1095
    %v1097 = vmul.f32 1.0, %v1096
    %v1098 = vxor.u32 %v1089, 2147483648
    %v1099 = vmul.f32 %v1098, 1.442695
    %v1100 = vpow.pop %v1099
    %v1101 = vadd.f32 %v1100, 1.0
    %v1102 = vrcp.pop %v1101
    %v1103 = vmul.f32 1.0, %v1102
    %v1104 = vtanh.pop %v1090
    %v1105 = vxor.u32 %v1091, 2147483648
    %v1106 = vmul.f32 %v1105, 1.442695
    %v1107 = vpow.pop %v1106
    %v1108 = vadd.f32 %v1107, 1.0
    %v1109 = vrcp.pop %v1108
    %v1110 = vmul.f32 1.0, %v1109
    %v1111 = vmul.f32 %v1103, %v998
    %v1112 = vmul.f32 %v1097, %v1104
    %v1113 = vadd.f32 %v1111, %v1112
    %v1114 = vtanh.pop %v1113
    %v1115 = vmul.f32 %v1110, %v1114
    %v1116 = vld [vmem:[#allocation2 + $0x80] sm:$0xff]
    %v1117 = vld [vmem:[#allocation2 + $0x88] sm:$0xff]
    %v1118 = vld [vmem:[#allocation2 + $0x90] sm:$0xff]
    %v1119 = vld [vmem:[#allocation2 + $0x98] sm:$0xff]
    %v1120 = vpack.c.bf16 %v1115, %v1115
    %1121 = vmatprep.subr.bf16.mxu0 %v626
    %1122 = vmatpush1.bf16.msra.mxu0 %v625
    %1123 = vmatprep.subr.bf16.mxu0 %v622
    %1124 = vmatpush1.bf16.msra.mxu0 %v621
    %1125 = vmatprep.subr.bf16.mxu0 %v618
    %1126 = vmatpush1.bf16.msra.mxu0 %v617
    %1127 = vmatprep.subr.bf16.mxu0 %v614
    %1128 = vmatpush1.bf16.msra.mxu0 %v613
    %1129 = vmatprep.subr.bf16.mxu0 %v610
    %1130 = vmatpush1.bf16.msra.mxu0 %v609
    %1131 = vmatprep.subr.bf16.mxu0 %v606
    %1132 = vmatpush1.bf16.msra.mxu0 %v605
    %1133 = vmatprep.subr.bf16.mxu0 %v602
    %1134 = vmatpush1.bf16.msra.mxu0 %v601
    %1135 = vmatprep.subr.bf16.mxu0 %v598
    %1136 = vmatpush1.bf16.msra.mxu0 %v597
    %1137 = vmatprep.subr.bf16.mxu0 0
    %1138 = vmatpush2.bf16.msra.mxu0 0
    %1139 = vmatprep.subr.bf16.mxu0 0
    %1140 = vmatpush2.bf16.msra.mxu0 0
    %1141 = vmatprep.subr.bf16.mxu0 0
    %1142 = vmatpush2.bf16.msra.mxu0 0
    %1143 = vmatprep.subr.bf16.mxu0 0
    %1144 = vmatpush2.bf16.msra.mxu0 0
    %1145 = vmatprep.subr.bf16.mxu0 0
    %1146 = vmatpush2.bf16.msra.mxu0 0
    %1147 = vmatprep.subr.bf16.mxu0 0
    %1148 = vmatpush2.bf16.msra.mxu0 0
    %1149 = vmatprep.subr.bf16.mxu0 0
    %1150 = vmatpush2.bf16.msra.mxu0 0
    %1151 = vmatprep.subr.bf16.mxu0 0
    %1152 = vmatpush2.bf16.msra.mxu0 0
    %1153 = vmatprep.mubr.bf16.mxu0 0
    %1154 = vmatmul.mubr.bf16.gmra.mxu0 %v1120
    %v1155 = vpop.f32.mrf.mxu0
    %v1156 = vadd.f32 0.0, %v1155
    %v1157 = vpop.f32.mrf.mxu0
    %v1158 = vadd.f32 0.0, %v1157
    %v1159 = vpop.f32.mrf.mxu0
    %v1160 = vpop.f32.mrf.mxu0
    %1161 = vdwg.mxu0
    %1162 = vmatprep.subr.bf16.mxu0 %v628
    %1163 = vmatpush1.bf16.msra.mxu0 %v627
    %1164 = vmatprep.subr.bf16.mxu0 %v624
    %1165 = vmatpush1.bf16.msra.mxu0 %v623
    %1166 = vmatprep.subr.bf16.mxu0 %v620
    %1167 = vmatpush1.bf16.msra.mxu0 %v619
    %1168 = vmatprep.subr.bf16.mxu0 %v616
    %1169 = vmatpush1.bf16.msra.mxu0 %v615
    %1170 = vmatprep.subr.bf16.mxu0 %v612
    %1171 = vmatpush1.bf16.msra.mxu0 %v611
    %1172 = vmatprep.subr.bf16.mxu0 %v608
    %1173 = vmatpush1.bf16.msra.mxu0 %v607
    %1174 = vmatprep.subr.bf16.mxu0 %v604
    %1175 = vmatpush1.bf16.msra.mxu0 %v603
    %1176 = vmatprep.subr.bf16.mxu0 %v600
    %1177 = vmatpush1.bf16.msra.mxu0 %v599
    %1178 = vmatprep.subr.bf16.mxu0 0
    %1179 = vmatpush2.bf16.msra.mxu0 0
    %1180 = vmatprep.subr.bf16.mxu0 0
    %1181 = vmatpush2.bf16.msra.mxu0 0
    %1182 = vmatprep.subr.bf16.mxu0 0
    %1183 = vmatpush2.bf16.msra.mxu0 0
    %1184 = vmatprep.subr.bf16.mxu0 0
    %1185 = vmatpush2.bf16.msra.mxu0 0
    %1186 = vmatprep.subr.bf16.mxu0 0
    %1187 = vmatpush2.bf16.msra.mxu0 0
    %1188 = vmatprep.subr.bf16.mxu0 0
    %1189 = vmatpush2.bf16.msra.mxu0 0
    %1190 = vmatprep.subr.bf16.mxu0 0
    %1191 = vmatpush2.bf16.msra.mxu0 0
    %1192 = vmatprep.subr.bf16.mxu0 0
    %1193 = vmatpush2.bf16.msra.mxu0 0
    %1194 = vmatprep.mubr.bf16.mxu0 0
    %1195 = vmatmul.mubr.bf16.gmra.mxu0 %v1120
    %v1196 = vpop.f32.mrf.mxu0
    %v1197 = vadd.f32 0.0, %v1196
    %v1198 = vpop.f32.mrf.mxu0
    %v1199 = vadd.f32 0.0, %v1198
    %v1200 = vpop.f32.mrf.mxu0
    %v1201 = vpop.f32.mrf.mxu0
    %1202 = vdwg.mxu0
    %v1203 = vadd.f32 %v1116, %v1156
    %v1204 = vadd.f32 %v1117, %v1158
    %v1205 = vadd.f32 %v1118, %v1197
    %v1206 = vadd.f32 %v1119, %v1199
    %v1207 = vxor.u32 %v1203, 2147483648
    %v1208 = vmul.f32 %v1207, 1.442695
    %v1209 = vpow.pop %v1208
    %v1210 = vadd.f32 %v1209, 1.0
    %v1211 = vrcp.pop %v1210
    %v1212 = vmul.f32 1.0, %v1211
    %v1213 = vxor.u32 %v1204, 2147483648
    %v1214 = vmul.f32 %v1213, 1.442695
    %v1215 = vpow.pop %v1214
    %v1216 = vadd.f32 %v1215, 1.0
    %v1217 = vrcp.pop %v1216
    %v1218 = vmul.f32 1.0, %v1217
    %v1219 = vtanh.pop %v1205
    %v1220 = vxor.u32 %v1206, 2147483648
    %v1221 = vmul.f32 %v1220, 1.442695
    %v1222 = vpow.pop %v1221
    %v1223 = vadd.f32 %v1222, 1.0
    %v1224 = vrcp.pop %v1223
    %v1225 = vmul.f32 1.0, %v1224
    %v1226 = vmul.f32 %v1218, %v1113
    %v1227 = vmul.f32 %v1212, %v1219
    %v1228 = vadd.f32 %v1226, %v1227
    %v1229 = vtanh.pop %v1228
    %v1230 = vmul.f32 %v1225, %v1229
    %v1231 = vld [vmem:[#allocation2 + $0xa0] sm:$0xff]
    %v1232 = vld [vmem:[#allocation2 + $0xa8] sm:$0xff]
    %v1233 = vld [vmem:[#allocation2 + $0xb0] sm:$0xff]
    %v1234 = vld [vmem:[#allocation2 + $0xb8] sm:$0xff]
    %v1235 = vpack.c.bf16 %v1230, %v1230
    %1236 = vmatprep.subr.bf16.mxu0 %v626
    %1237 = vmatpush1.bf16.msra.mxu0 %v625
    %1238 = vmatprep.subr.bf16.mxu0 %v622
    %1239 = vmatpush1.bf16.msra.mxu0 %v621
    %1240 = vmatprep.subr.bf16.mxu0 %v618
    %1241 = vmatpush1.bf16.msra.mxu0 %v617
    %1242 = vmatprep.subr.bf16.mxu0 %v614
    %1243 = vmatpush1.bf16.msra.mxu0 %v613
    %1244 = vmatprep.subr.bf16.mxu0 %v610
    %1245 = vmatpush1.bf16.msra.mxu0 %v609
    %1246 = vmatprep.subr.bf16.mxu0 %v606
    %1247 = vmatpush1.bf16.msra.mxu0 %v605
    %1248 = vmatprep.subr.bf16.mxu0 %v602
    %1249 = vmatpush1.bf16.msra.mxu0 %v601
    %1250 = vmatprep.subr.bf16.mxu0 %v598
    %1251 = vmatpush1.bf16.msra.mxu0 %v597
    %1252 = vmatprep.subr.bf16.mxu0 0
    %1253 = vmatpush2.bf16.msra.mxu0 0
    %1254 = vmatprep.subr.bf16.mxu0 0
    %1255 = vmatpush2.bf16.msra.mxu0 0
    %1256 = vmatprep.subr.bf16.mxu0 0
    %1257 = vmatpush2.bf16.msra.mxu0 0
    %1258 = vmatprep.subr.bf16.mxu0 0
    %1259 = vmatpush2.bf16.msra.mxu0 0
    %1260 = vmatprep.subr.bf16.mxu0 0
    %1261 = vmatpush2.bf16.msra.mxu0 0
    %1262 = vmatprep.subr.bf16.mxu0 0
    %1263 = vmatpush2.bf16.msra.mxu0 0
    %1264 = vmatprep.subr.bf16.mxu0 0
    %1265 = vmatpush2.bf16.msra.mxu0 0
    %1266 = vmatprep.subr.bf16.mxu0 0
    %1267 = vmatpush2.bf16.msra.mxu0 0
    %1268 = vmatprep.mubr.bf16.mxu0 0
    %1269 = vmatmul.mubr.bf16.gmra.mxu0 %v1235
    %v1270 = vpop.f32.mrf.mxu0
    %v1271 = vadd.f32 0.0, %v1270
    %v1272 = vpop.f32.mrf.mxu0
    %v1273 = vadd.f32 0.0, %v1272
    %v1274 = vpop.f32.mrf.mxu0
    %v1275 = vpop.f32.mrf.mxu0
    %1276 = vdwg.mxu0
    %1277 = vmatprep.subr.bf16.mxu0 %v628
    %1278 = vmatpush1.bf16.msra.mxu0 %v627
    %1279 = vmatprep.subr.bf16.mxu0 %v624
    %1280 = vmatpush1.bf16.msra.mxu0 %v623
    %1281 = vmatprep.subr.bf16.mxu0 %v620
    %1282 = vmatpush1.bf16.msra.mxu0 %v619
    %1283 = vmatprep.subr.bf16.mxu0 %v616
    %1284 = vmatpush1.bf16.msra.mxu0 %v615
    %1285 = vmatprep.subr.bf16.mxu0 %v612
    %1286 = vmatpush1.bf16.msra.mxu0 %v611
    %1287 = vmatprep.subr.bf16.mxu0 %v608
    %1288 = vmatpush1.bf16.msra.mxu0 %v607
    %1289 = vmatprep.subr.bf16.mxu0 %v604
    %1290 = vmatpush1.bf16.msra.mxu0 %v603
    %1291 = vmatprep.subr.bf16.mxu0 %v600
    %1292 = vmatpush1.bf16.msra.mxu0 %v599
    %1293 = vmatprep.subr.bf16.mxu0 0
    %1294 = vmatpush2.bf16.msra.mxu0 0
    %1295 = vmatprep.subr.bf16.mxu0 0
    %1296 = vmatpush2.bf16.msra.mxu0 0
    %1297 = vmatprep.subr.bf16.mxu0 0
    %1298 = vmatpush2.bf16.msra.mxu0 0
    %1299 = vmatprep.subr.bf16.mxu0 0
    %1300 = vmatpush2.bf16.msra.mxu0 0
    %1301 = vmatprep.subr.bf16.mxu0 0
    %1302 = vmatpush2.bf16.msra.mxu0 0
    %1303 = vmatprep.subr.bf16.mxu0 0
    %1304 = vmatpush2.bf16.msra.mxu0 0
    %1305 = vmatprep.subr.bf16.mxu0 0
    %1306 = vmatpush2.bf16.msra.mxu0 0
    %1307 = vmatprep.subr.bf16.mxu0 0
    %1308 = vmatpush2.bf16.msra.mxu0 0
    %1309 = vmatprep.mubr.bf16.mxu0 0
    %1310 = vmatmul.mubr.bf16.gmra.mxu0 %v1235
    %v1311 = vpop.f32.mrf.mxu0
    %v1312 = vadd.f32 0.0, %v1311
    %v1313 = vpop.f32.mrf.mxu0
    %v1314 = vadd.f32 0.0, %v1313
    %v1315 = vpop.f32.mrf.mxu0
    %v1316 = vpop.f32.mrf.mxu0
    %1317 = vdwg.mxu0
    %v1318 = vadd.f32 %v1231, %v1271
    %v1319 = vadd.f32 %v1232, %v1273
    %v1320 = vadd.f32 %v1233, %v1312
    %v1321 = vadd.f32 %v1234, %v1314
    %v1322 = vxor.u32 %v1318, 2147483648
    %v1323 = vmul.f32 %v1322, 1.442695
    %v1324 = vpow.pop %v1323
    %v1325 = vadd.f32 %v1324, 1.0
    %v1326 = vrcp.pop %v1325
    %v1327 = vmul.f32 1.0, %v1326
    %v1328 = vxor.u32 %v1319, 2147483648
    %v1329 = vmul.f32 %v1328, 1.442695
    %v1330 = vpow.pop %v1329
    %v1331 = vadd.f32 %v1330, 1.0
    %v1332 = vrcp.pop %v1331
    %v1333 = vmul.f32 1.0, %v1332
    %v1334 = vtanh.pop %v1320
    %v1335 = vxor.u32 %v1321, 2147483648
    %v1336 = vmul.f32 %v1335, 1.442695
    %v1337 = vpow.pop %v1336
    %v1338 = vadd.f32 %v1337, 1.0
    %v1339 = vrcp.pop %v1338
    %v1340 = vmul.f32 1.0, %v1339
    %v1341 = vmul.f32 %v1333, %v1228
    %v1342 = vmul.f32 %v1327, %v1334
    %v1343 = vadd.f32 %v1341, %v1342
    %v1344 = vtanh.pop %v1343
    %v1345 = vmul.f32 %v1340, %v1344
    %v1346 = vld [vmem:[#allocation2 + $0xc0] sm:$0xff]
    %v1347 = vld [vmem:[#allocation2 + $0xc8] sm:$0xff]
    %v1348 = vld [vmem:[#allocation2 + $0xd0] sm:$0xff]
    %v1349 = vld [vmem:[#allocation2 + $0xd8] sm:$0xff]
    %v1350 = vpack.c.bf16 %v1345, %v1345
    %1351 = vmatprep.subr.bf16.mxu0 %v626
    %1352 = vmatpush1.bf16.msra.mxu0 %v625
    %1353 = vmatprep.subr.bf16.mxu0 %v622
    %1354 = vmatpush1.bf16.msra.mxu0 %v621
    %1355 = vmatprep.subr.bf16.mxu0 %v618
    %1356 = vmatpush1.bf16.msra.mxu0 %v617
    %1357 = vmatprep.subr.bf16.mxu0 %v614
    %1358 = vmatpush1.bf16.msra.mxu0 %v613
    %1359 = vmatprep.subr.bf16.mxu0 %v610
    %1360 = vmatpush1.bf16.msra.mxu0 %v609
    %1361 = vmatprep.subr.bf16.mxu0 %v606
    %1362 = vmatpush1.bf16.msra.mxu0 %v605
    %1363 = vmatprep.subr.bf16.mxu0 %v602
    %1364 = vmatpush1.bf16.msra.mxu0 %v601
    %1365 = vmatprep.subr.bf16.mxu0 %v598
    %1366 = vmatpush1.bf16.msra.mxu0 %v597
    %1367 = vmatprep.subr.bf16.mxu0 0
    %1368 = vmatpush2.bf16.msra.mxu0 0
    %1369 = vmatprep.subr.bf16.mxu0 0
    %1370 = vmatpush2.bf16.msra.mxu0 0
    %1371 = vmatprep.subr.bf16.mxu0 0
    %1372 = vmatpush2.bf16.msra.mxu0 0
    %1373 = vmatprep.subr.bf16.mxu0 0
    %1374 = vmatpush2.bf16.msra.mxu0 0
    %1375 = vmatprep.subr.bf16.mxu0 0
    %1376 = vmatpush2.bf16.msra.mxu0 0
    %1377 = vmatprep.subr.bf16.mxu0 0
    %1378 = vmatpush2.bf16.msra.mxu0 0
    %1379 = vmatprep.subr.bf16.mxu0 0
    %1380 = vmatpush2.bf16.msra.mxu0 0
    %1381 = vmatprep.subr.bf16.mxu0 0
    %1382 = vmatpush2.bf16.msra.mxu0 0
    %1383 = vmatprep.mubr.bf16.mxu0 0
    %1384 = vmatmul.mubr.bf16.gmra.mxu0 %v1350
    %v1385 = vpop.f32.mrf.mxu0
    %v1386 = vadd.f32 0.0, %v1385
    %v1387 = vpop.f32.mrf.mxu0
    %v1388 = vadd.f32 0.0, %v1387
    %v1389 = vpop.f32.mrf.mxu0
    %v1390 = vpop.f32.mrf.mxu0
    %1391 = vdwg.mxu0
    %1392 = vmatprep.subr.bf16.mxu0 %v628
    %1393 = vmatpush1.bf16.msra.mxu0 %v627
    %1394 = vmatprep.subr.bf16.mxu0 %v624
    %1395 = vmatpush1.bf16.msra.mxu0 %v623
    %1396 = vmatprep.subr.bf16.mxu0 %v620
    %1397 = vmatpush1.bf16.msra.mxu0 %v619
    %1398 = vmatprep.subr.bf16.mxu0 %v616
    %1399 = vmatpush1.bf16.msra.mxu0 %v615
    %1400 = vmatprep.subr.bf16.mxu0 %v612
    %1401 = vmatpush1.bf16.msra.mxu0 %v611
    %1402 = vmatprep.subr.bf16.mxu0 %v608
    %1403 = vmatpush1.bf16.msra.mxu0 %v607
    %1404 = vmatprep.subr.bf16.mxu0 %v604
    %1405 = vmatpush1.bf16.msra.mxu0 %v603
    %1406 = vmatprep.subr.bf16.mxu0 %v600
    %1407 = vmatpush1.bf16.msra.mxu0 %v599
    %1408 = vmatprep.subr.bf16.mxu0 0
    %1409 = vmatpush2.bf16.msra.mxu0 0
    %1410 = vmatprep.subr.bf16.mxu0 0
    %1411 = vmatpush2.bf16.msra.mxu0 0
    %1412 = vmatprep.subr.bf16.mxu0 0
    %1413 = vmatpush2.bf16.msra.mxu0 0
    %1414 = vmatprep.subr.bf16.mxu0 0
    %1415 = vmatpush2.bf16.msra.mxu0 0
    %1416 = vmatprep.subr.bf16.mxu0 0
    %1417 = vmatpush2.bf16.msra.mxu0 0
    %1418 = vmatprep.subr.bf16.mxu0 0
    %1419 = vmatpush2.bf16.msra.mxu0 0
    %1420 = vmatprep.subr.bf16.mxu0 0
    %1421 = vmatpush2.bf16.msra.mxu0 0
    %1422 = vmatprep.subr.bf16.mxu0 0
    %1423 = vmatpush2.bf16.msra.mxu0 0
    %1424 = vmatprep.mubr.bf16.mxu0 0
    %1425 = vmatmul.mubr.bf16.gmra.mxu0 %v1350
    %v1426 = vpop.f32.mrf.mxu0
    %v1427 = vadd.f32 0.0, %v1426
    %v1428 = vpop.f32.mrf.mxu0
    %v1429 = vadd.f32 0.0, %v1428
    %v1430 = vpop.f32.mrf.mxu0
    %v1431 = vpop.f32.mrf.mxu0
    %1432 = vdwg.mxu0
    %v1433 = vadd.f32 %v1346, %v1386
    %v1434 = vadd.f32 %v1347, %v1388
    %v1435 = vadd.f32 %v1348, %v1427
    %v1436 = vadd.f32 %v1349, %v1429
    %v1437 = vxor.u32 %v1433, 2147483648
    %v1438 = vmul.f32 %v1437, 1.442695
    %v1439 = vpow.pop %v1438
    %v1440 = vadd.f32 %v1439, 1.0
    %v1441 = vrcp.pop %v1440
    %v1442 = vmul.f32 1.0, %v1441
    %v1443 = vxor.u32 %v1434, 2147483648
    %v1444 = vmul.f32 %v1443, 1.442695
    %v1445 = vpow.pop %v1444
    %v1446 = vadd.f32 %v1445, 1.0
    %v1447 = vrcp.pop %v1446
    %v1448 = vmul.f32 1.0, %v1447
    %v1449 = vtanh.pop %v1435
    %v1450 = vxor.u32 %v1436, 2147483648
    %v1451 = vmul.f32 %v1450, 1.442695
    %v1452 = vpow.pop %v1451
    %v1453 = vadd.f32 %v1452, 1.0
    %v1454 = vrcp.pop %v1453
    %v1455 = vmul.f32 1.0, %v1454
    %v1456 = vmul.f32 %v1448, %v1343
    %v1457 = vmul.f32 %v1442, %v1449
    %v1458 = vadd.f32 %v1456, %v1457
    %v1459 = vtanh.pop %v1458
    %v1460 = vmul.f32 %v1455, %v1459
    %v1461 = vld [vmem:[#allocation2 + $0xe0] sm:$0xff]
    %v1462 = vld [vmem:[#allocation2 + $0xe8] sm:$0xff]
    %v1463 = vld [vmem:[#allocation2 + $0xf0] sm:$0xff]
    %v1464 = vld [vmem:[#allocation2 + $0xf8] sm:$0xff]
    %v1465 = vpack.c.bf16 %v1460, %v1460
    %1466 = vmatprep.subr.bf16.mxu0 %v626
    %1467 = vmatpush1.bf16.msra.mxu0 %v625
    %1468 = vmatprep.subr.bf16.mxu0 %v622
    %1469 = vmatpush1.bf16.msra.mxu0 %v621
    %1470 = vmatprep.subr.bf16.mxu0 %v618
    %1471 = vmatpush1.bf16.msra.mxu0 %v617
    %1472 = vmatprep.subr.bf16.mxu0 %v614
    %1473 = vmatpush1.bf16.msra.mxu0 %v613
    %1474 = vmatprep.subr.bf16.mxu0 %v610
    %1475 = vmatpush1.bf16.msra.mxu0 %v609
    %1476 = vmatprep.subr.bf16.mxu0 %v606
    %1477 = vmatpush1.bf16.msra.mxu0 %v605
    %1478 = vmatprep.subr.bf16.mxu0 %v602
    %1479 = vmatpush1.bf16.msra.mxu0 %v601
    %1480 = vmatprep.subr.bf16.mxu0 %v598
    %1481 = vmatpush1.bf16.msra.mxu0 %v597
    %1482 = vmatprep.subr.bf16.mxu0 0
    %1483 = vmatpush2.bf16.msra.mxu0 0
    %1484 = vmatprep.subr.bf16.mxu0 0
    %1485 = vmatpush2.bf16.msra.mxu0 0
    %1486 = vmatprep.subr.bf16.mxu0 0
    %1487 = vmatpush2.bf16.msra.mxu0 0
    %1488 = vmatprep.subr.bf16.mxu0 0
    %1489 = vmatpush2.bf16.msra.mxu0 0
    %1490 = vmatprep.subr.bf16.mxu0 0
    %1491 = vmatpush2.bf16.msra.mxu0 0
    %1492 = vmatprep.subr.bf16.mxu0 0
    %1493 = vmatpush2.bf16.msra.mxu0 0
    %1494 = vmatprep.subr.bf16.mxu0 0
    %1495 = vmatpush2.bf16.msra.mxu0 0
    %1496 = vmatprep.subr.bf16.mxu0 0
    %1497 = vmatpush2.bf16.msra.mxu0 0
    %1498 = vmatprep.mubr.bf16.mxu0 0
    %1499 = vmatmul.mubr.bf16.gmra.mxu0 %v1465
    %v1500 = vpop.f32.mrf.mxu0
    %v1501 = vadd.f32 0.0, %v1500
    %v1502 = vpop.f32.mrf.mxu0
    %v1503 = vadd.f32 0.0, %v1502
    %v1504 = vpop.f32.mrf.mxu0
    %v1505 = vpop.f32.mrf.mxu0
    %1506 = vdwg.mxu0
    %1507 = vmatprep.subr.bf16.mxu0 %v628
    %1508 = vmatpush1.bf16.msra.mxu0 %v627
    %1509 = vmatprep.subr.bf16.mxu0 %v624
    %1510 = vmatpush1.bf16.msra.mxu0 %v623
    %1511 = vmatprep.subr.bf16.mxu0 %v620
    %1512 = vmatpush1.bf16.msra.mxu0 %v619
    %1513 = vmatprep.subr.bf16.mxu0 %v616
    %1514 = vmatpush1.bf16.msra.mxu0 %v615
    %1515 = vmatprep.subr.bf16.mxu0 %v612
    %1516 = vmatpush1.bf16.msra.mxu0 %v611
    %1517 = vmatprep.subr.bf16.mxu0 %v608
    %1518 = vmatpush1.bf16.msra.mxu0 %v607
    %1519 = vmatprep.subr.bf16.mxu0 %v604
    %1520 = vmatpush1.bf16.msra.mxu0 %v603
    %1521 = vmatprep.subr.bf16.mxu0 %v600
    %1522 = vmatpush1.bf16.msra.mxu0 %v599
    %1523 = vmatprep.subr.bf16.mxu0 0
    %1524 = vmatpush2.bf16.msra.mxu0 0
    %1525 = vmatprep.subr.bf16.mxu0 0
    %1526 = vmatpush2.bf16.msra.mxu0 0
    %1527 = vmatprep.subr.bf16.mxu0 0
    %1528 = vmatpush2.bf16.msra.mxu0 0
    %1529 = vmatprep.subr.bf16.mxu0 0
    %1530 = vmatpush2.bf16.msra.mxu0 0
    %1531 = vmatprep.subr.bf16.mxu0 0
    %1532 = vmatpush2.bf16.msra.mxu0 0
    %1533 = vmatprep.subr.bf16.mxu0 0
    %1534 = vmatpush2.bf16.msra.mxu0 0
    %1535 = vmatprep.subr.bf16.mxu0 0
    %1536 = vmatpush2.bf16.msra.mxu0 0
    %1537 = vmatprep.subr.bf16.mxu0 0
    %1538 = vmatpush2.bf16.msra.mxu0 0
    %1539 = vmatprep.mubr.bf16.mxu0 0
    %1540 = vmatmul.mubr.bf16.gmra.mxu0 %v1465
    %v1541 = vpop.f32.mrf.mxu0
    %v1542 = vadd.f32 0.0, %v1541
    %v1543 = vpop.f32.mrf.mxu0
    %v1544 = vadd.f32 0.0, %v1543
    %v1545 = vpop.f32.mrf.mxu0
    %v1546 = vpop.f32.mrf.mxu0
    %1547 = vdwg.mxu0
    %v1548 = vadd.f32 %v1461, %v1501
    %v1549 = vadd.f32 %v1462, %v1503
    %v1550 = vadd.f32 %v1463, %v1542
    %v1551 = vadd.f32 %v1464, %v1544
    %v1552 = vxor.u32 %v1548, 2147483648
    %v1553 = vmul.f32 %v1552, 1.442695
    %v1554 = vpow.pop %v1553
    %v1555 = vadd.f32 %v1554, 1.0
    %v1556 = vrcp.pop %v1555
    %v1557 = vmul.f32 1.0, %v1556
    %v1558 = vxor.u32 %v1549, 2147483648
    %v1559 = vmul.f32 %v1558, 1.442695
    %v1560 = vpow.pop %v1559
    %v1561 = vadd.f32 %v1560, 1.0
    %v1562 = vrcp.pop %v1561
    %v1563 = vmul.f32 1.0, %v1562
    %v1564 = vtanh.pop %v1550
    %v1565 = vxor.u32 %v1551, 2147483648
    %v1566 = vmul.f32 %v1565, 1.442695
    %v1567 = vpow.pop %v1566
    %v1568 = vadd.f32 %v1567, 1.0
    %v1569 = vrcp.pop %v1568
    %v1570 = vmul.f32 1.0, %v1569
    %v1571 = vmul.f32 %v1563, %v1458
    %v1572 = vmul.f32 %v1557, %v1564
    %v1573 = vadd.f32 %v1571, %v1572
    %v1574 = vtanh.pop %v1573
    %v1575 = vmul.f32 %v1570, %v1574
    %v1576 = vpack.c.bf16 %v1575, %v1575
    %v1577 = vld [vmem:[#allocation9] sm:$0xf]
    %v1578 = vld [vmem:[#allocation9 + $0x4] sm:$0xf]
    %v1579 = vld [vmem:[#allocation9 + $0x8] sm:$0xf]
    %v1580 = vld [vmem:[#allocation9 + $0xc] sm:$0xf]
    %v1581 = vld [vmem:[#allocation9 + $0x10] sm:$0xf]
    %v1582 = vld [vmem:[#allocation9 + $0x14] sm:$0xf]
    %v1583 = vld [vmem:[#allocation9 + $0x18] sm:$0xf]
    %v1584 = vld [vmem:[#allocation9 + $0x1c] sm:$0xf]
    %v1585 = vld [vmem:[#allocation9 + $0x20] sm:$0xf]
    %v1586 = vld [vmem:[#allocation9 + $0x24] sm:$0xf]
    %v1587 = vld [vmem:[#allocation9 + $0x28] sm:$0xf]
    %v1588 = vld [vmem:[#allocation9 + $0x2c] sm:$0xf]
    %v1589 = vld [vmem:[#allocation9 + $0x30] sm:$0xf]
    %v1590 = vld [vmem:[#allocation9 + $0x34] sm:$0xf]
    %v1591 = vld [vmem:[#allocation9 + $0x38] sm:$0xf]
    %v1592 = vld [vmem:[#allocation9 + $0x3c] sm:$0xf]
    %v1593 = vld [vmem:[%s5] sm:$0x1]
    %v1595 = vlaneseq
    %v1596 = vshrl.u32 %v1595, 7
    %v1597 = vsub.s32 0, %v1596
    %v1598 = vrot.slane %v1593, %v1597
    %v1616 = vunpack.c.l.b16 %v1577
    %v1617 = vunpack.c.l.b16 %v1578
    %v1618 = vunpack.c.l.b16 %v1579
    %v1619 = vunpack.c.l.b16 %v1580
    %v1620 = vunpack.c.l.b16 %v1581
    %v1621 = vunpack.c.l.b16 %v1582
    %v1622 = vunpack.c.l.b16 %v1583
    %v1623 = vunpack.c.l.b16 %v1584
    %v1624 = vunpack.c.l.b16 %v1585
    %v1625 = vunpack.c.l.b16 %v1586
    %v1626 = vunpack.c.l.b16 %v1587
    %v1627 = vunpack.c.l.b16 %v1588
    %v1628 = vunpack.c.l.b16 %v1589
    %v1629 = vunpack.c.l.b16 %v1590
    %v1630 = vunpack.c.l.b16 %v1591
    %v1631 = vunpack.c.l.b16 %v1592
    %v1632 = vpack.c.b16 %v1617, %v1616
    %v1633 = vpack.c.b16 %v1619, %v1618
    %v1634 = vpack.c.b16 %v1621, %v1620
    %v1635 = vpack.c.b16 %v1623, %v1622
    %v1636 = vpack.c.b16 %v1625, %v1624
    %v1637 = vpack.c.b16 %v1627, %v1626
    %v1638 = vpack.c.b16 %v1629, %v1628
    %v1639 = vpack.c.b16 %v1631, %v1630
    %1648 = vmatprep.subr.bf16.mxu0 0
    %1649 = vmatpush1.bf16.msra.mxu0 %v1639
    %1650 = vmatprep.subr.bf16.mxu0 0
    %1651 = vmatpush1.bf16.msra.mxu0 %v1638
    %1652 = vmatprep.subr.bf16.mxu0 0
    %1653 = vmatpush1.bf16.msra.mxu0 %v1637
    %1654 = vmatprep.subr.bf16.mxu0 0
    %1655 = vmatpush1.bf16.msra.mxu0 %v1636
    %1656 = vmatprep.subr.bf16.mxu0 0
    %1657 = vmatpush1.bf16.msra.mxu0 %v1635
    %1658 = vmatprep.subr.bf16.mxu0 0
    %1659 = vmatpush1.bf16.msra.mxu0 %v1634
    %1660 = vmatprep.subr.bf16.mxu0 0
    %1661 = vmatpush1.bf16.msra.mxu0 %v1633
    %1662 = vmatprep.subr.bf16.mxu0 0
    %1663 = vmatpush1.bf16.msra.mxu0 %v1632
    %1664 = vmatprep.subr.bf16.mxu0 0
    %1665 = vmatpush2.bf16.msra.mxu0 0
    %1666 = vmatprep.subr.bf16.mxu0 0
    %1667 = vmatpush2.bf16.msra.mxu0 0
    %1668 = vmatprep.subr.bf16.mxu0 0
    %1669 = vmatpush2.bf16.msra.mxu0 0
    %1670 = vmatprep.subr.bf16.mxu0 0
    %1671 = vmatpush2.bf16.msra.mxu0 0
    %1672 = vmatprep.subr.bf16.mxu0 0
    %1673 = vmatpush2.bf16.msra.mxu0 0
    %1674 = vmatprep.subr.bf16.mxu0 0
    %1675 = vmatpush2.bf16.msra.mxu0 0
    %1676 = vmatprep.subr.bf16.mxu0 0
    %1677 = vmatpush2.bf16.msra.mxu0 0
    %1678 = vmatprep.subr.bf16.mxu0 0
    %1679 = vmatpush2.bf16.msra.mxu0 0
    %1680 = vmatprep.mubr.bf16.mxu0 0
    %1681 = vmatmul.mubr.bf16.gmra.mxu0 %v1576
    %v1682 = vpop.f32.mrf.mxu0
    %v1683 = vadd.f32 %v1598, %v1682
    %v1684 = vpop.f32.mrf.mxu0
    %v1685 = vpop.f32.mrf.mxu0
    %v1686 = vpop.f32.mrf.mxu0
    %1687 = vdwg.mxu0
    %1688 = vst [vmem:[#allocation11] sm:$0xff] %v1683
    // Predicated region
    $region42: #{tpu_custom_call.1} parent=1 // pred_check
      _
    $region43: #{tpu_custom_call.1} parent=1 // pred_check_branch
      %1690 = sbr.rel (0) target = $region45
    $region44: #{tpu_custom_call.1} parent=1 // pred_region
      %s1692 = ssub.s32 128, 128
      %1693 = vsyncadd [#allocation5], %s1692
      %s1695 = sshll.u32 [#allocation11], 4
      %s1696 = int_to_ptr.vmem [resolvable:$true] %s1695
      %1698 = dma.vmem_to_hbm [thread:$0]  %s1696, 128, %s6, [#allocation5]
    $region45: #{tpu_custom_call.1} parent=1 // pred_fallthru
      _
    // Predicated region
    $region46: #{tpu_custom_call.1} parent=1 // pred_check
      _
    $region47: #{tpu_custom_call.1} parent=1 // pred_check_branch
      %1700 = sbr.rel (0) target = $region49
    $region48: #{tpu_custom_call.1} parent=1 // pred_region
      %1701 = dma.done [#allocation5], 128
    $region49: #{tpu_custom_call.1} parent=1 // pred_fallthru
      _
    %1702 = vsyncpa [#allocation4], 1
    %1703 = vsyncpa [#allocation7], 1
    %1704 = vsyncpa [#allocation10], 1
    %1705 = vsyncpa [#allocation5], 1

</llo_original>
